<compile_context>
chip_gen: v7x
topology: tpu7x:2x2x1
jax: 0.10.0
libtpu: 0.0.40
codegen_flags: <defaults>
</compile_context>

<pallas_src>
import functools

import jax
import jax.numpy as jnp
import numpy as np
from jax import lax
from jax.experimental import pallas as pl
from jax.experimental.pallas import tpu as pltpu


# ----------------------------------------------------------------------------
# Fused kernel: one grid step == one batch element.
# ----------------------------------------------------------------------------
def _fused_attention_kernel(H, W, C, TQ,
                            x_ref, mask_ref, wconv_ref, bconv_ref,
                            g_ref, beta_ref, win_ref, bin_ref,
                            wo_ref, bo_ref, o_ref):
    # x_ref:     (C, N + 2*(W+1)) f32  flattened H*W tokens, zero-padded both ends
    # mask_ref:  (2, N)           f32  row 0: (w != 0), row 1: (w != W-1)
    # wconv_ref: (3, C, 9)        f32  depthwise 3x3 taps, t = (dy+1)*3+(dx+1)
    # bconv_ref / g_ref / beta_ref: (3, C, 1) f32  conv bias / LN gamma / LN beta
    # win_ref:   (3, C, C)  bf16  per-projection in-proj weights (q pre-scaled)
    # bin_ref:   (3, C, 1)  f32   per-projection in-proj bias   (q pre-scaled)
    # wo_ref:    (C, C) bf16      bo_ref: (C, 1) f32
    # o_ref:     (C, N)           output, lane-dense (N = H*W on the lane axis)
    N = H * W
    P = W + 1
    f32 = jnp.float32
    bf16 = jnp.bfloat16

    xv = x_ref[...].astype(f32)                         # (C, Npad)
    mask_l = mask_ref[0:1, :]                           # (1, N)
    mask_r = mask_ref[1:2, :]

    wq_c = wconv_ref[0]                                 # (C, 9)
    wk_c = wconv_ref[1]
    wv_c = wconv_ref[2]

    # Depthwise 3x3 conv, tap-major: each shifted/masked view is consumed into
    # all three accumulators immediately, so only one tap is live at a time.
    acc_q = jnp.zeros((C, N), f32)
    acc_k = jnp.zeros((C, N), f32)
    acc_v = jnp.zeros((C, N), f32)
    t = 0
    for dy in (-1, 0, 1):
        for dx in (-1, 0, 1):
            start = P + dy * W + dx
            sl = xv[:, start:start + N]                 # (C, N)
            if dx == -1:
                sl = sl * mask_l                        # kill column wrap
            elif dx == 1:
                sl = sl * mask_r
            acc_q = acc_q + sl * wq_c[:, t:t + 1]
            acc_k = acc_k + sl * wk_c[:, t:t + 1]
            acc_v = acc_v + sl * wv_c[:, t:t + 1]
            t += 1

    # Bias + ReLU + LayerNorm over channels (sublane axis), eps = 1e-5.
    def _bias_relu_ln(a, j):
        a = jnp.maximum(a + bconv_ref[j], 0.0)
        mean = jnp.mean(a, axis=0, keepdims=True)
        var = jnp.mean(jnp.square(a - mean), axis=0, keepdims=True)
        a = (a - mean) * lax.rsqrt(var + 1e-5)
        return (a * g_ref[j] + beta_ref[j]).astype(bf16)   # bf16 MXU operand

    q_ln = _bias_relu_ln(acc_q, 0)                      # (C, N) bf16
    k_ln = _bias_relu_ln(acc_k, 1)
    v_ln = _bias_relu_ln(acc_v, 2)

    # In-projection per block (no (3C, N) concat / sublane repack); the
    # 1/sqrt(C) scale is already folded into win_ref[0] / bin_ref[0].
    def _in_proj(x_ln, j):
        y = jnp.dot(win_ref[j], x_ln, preferred_element_type=f32) + bin_ref[j]
        return y.astype(bf16)                           # (C, N) lane-dense

    qp = _in_proj(q_ln, 0)
    kp = _in_proj(k_ln, 1)
    vp = _in_proj(v_ln, 2)
    wo = wo_ref[...]                                    # (C, C) bf16
    bo = bo_ref[...]                                    # (C, 1) f32

    # Attention, tiled over TQ query columns; everything stays lane-dense.
    for qi in range(N // TQ):
        q0 = qi * TQ
        q_blk = qp[:, q0:q0 + TQ]                       # (C, TQ) bf16
        # s[k, q] = sum_c kp[c, k] * q_blk[c, q]  (contract over sublanes)
        s = lax.dot_general(kp, q_blk, (((0,), (0,)), ((), ())),
                            preferred_element_type=f32)            # (N, TQ)
        m = jnp.max(s, axis=0, keepdims=True)           # (1, TQ) lane-dense
        p = jnp.exp(s - m)                               # (N, TQ) f32
        l = jnp.sum(p, axis=0, keepdims=True)            # (1, TQ)
        # ctx[c, q] = sum_k vp[c, k] * p[k, q]
        ctx = lax.dot_general(vp, p.astype(bf16), (((1,), (0,)), ((), ())),
                              preferred_element_type=f32)           # (C, TQ)
        out = jnp.dot(wo, ctx.astype(bf16), preferred_element_type=f32)
        # 1/l commutes with the per-column out-projection; exact reciprocal on
        # the (1, TQ) row-sum vector (cheap; avoids the approx-recip error).
        out = out * pl.reciprocal(l, approx=False) + bo
        o_ref[:, q0:q0 + TQ] = out.astype(o_ref.dtype)


# ----------------------------------------------------------------------------
# Wrapper: parameter re-layout (trace-time) + the single pallas_call.
# ----------------------------------------------------------------------------
def attention_forward(x_nchw, prm):
    B, C, H, W = x_nchw.shape
    N = H * W
    pad = W + 1
    Npad = N + 2 * pad
    scale = 1.0 / float(np.sqrt(C))                     # num_heads=1, head_dim=C

    # Query-tile width (lane axis).
    if N % 128 == 0:
        TQ = 128
    elif N % 64 == 0:
        TQ = 64
    else:
        TQ = N

    # Flatten spatial dims and zero-pad once (shared by q/k/v taps).  Input is
    # kept in its native dtype; the kernel upcasts to f32 for the VPU math.
    x_flat = x_nchw.reshape(B, C, N)
    x_pad = jnp.pad(x_flat, ((0, 0), (0, 0), (pad, pad)))

    # Edge masks on the output column index (constant, reused for all B).
    col = np.arange(N) % W
    masks = jnp.asarray(
        np.stack([(col != 0), (col != W - 1)]).astype(np.float32))   # (2, N)

    # Depthwise conv weights (3,3,C) -> (C,9), stacked for q/k/v.
    def cw(w):
        return jnp.transpose(w, (2, 0, 1)).reshape(C, 9)
    wconv = jnp.stack([cw(prm["wq_conv"]), cw(prm["wk_conv"]),
                       cw(prm["wv_conv"])]).astype(jnp.float32)
    bconv = jnp.stack([prm["bq_conv"], prm["bk_conv"],
                       prm["bv_conv"]])[:, :, None].astype(jnp.float32)
    gamma = jnp.stack([prm["gq"], prm["gk"],
                       prm["gv"]])[:, :, None].astype(jnp.float32)
    beta = jnp.stack([prm["betaq"], prm["betak"],
                      prm["betav"]])[:, :, None].astype(jnp.float32)

    # Per-projection in-projection weights, 1/sqrt(C) folded into the q block.
    # Weights go to bf16 for the MXU (f32 accumulation in-kernel).
    w_in = jnp.stack([prm["Wq"] * scale, prm["Wk"],
                      prm["Wv"]]).astype(jnp.bfloat16)               # (3, C, C)
    b_in = jnp.stack([prm["bq"] * scale, prm["bk"],
                      prm["bv"]])[:, :, None].astype(jnp.float32)    # (3, C, 1)
    wo = prm["Wo"].astype(jnp.bfloat16)
    bo = prm["bo"][:, None].astype(jnp.float32)

    kernel = functools.partial(_fused_attention_kernel, H, W, C, TQ)

    out = pl.pallas_call(
        kernel,
        out_shape=jax.ShapeDtypeStruct((B, C, N), x_nchw.dtype),
        grid=(B,),
        in_specs=[
            pl.BlockSpec((None, C, Npad), lambda i: (i, 0, 0)),   # x (padded, flat)
            pl.BlockSpec((2, N), lambda i: (0, 0)),               # edge masks
            pl.BlockSpec((3, C, 9), lambda i: (0, 0, 0)),         # conv weights
            pl.BlockSpec((3, C, 1), lambda i: (0, 0, 0)),         # conv bias
            pl.BlockSpec((3, C, 1), lambda i: (0, 0, 0)),         # LN gamma
            pl.BlockSpec((3, C, 1), lambda i: (0, 0, 0)),         # LN beta
            pl.BlockSpec((3, C, C), lambda i: (0, 0, 0)),         # W_in (per block, bf16)
            pl.BlockSpec((3, C, 1), lambda i: (0, 0, 0)),         # b_in
            pl.BlockSpec((C, C), lambda i: (0, 0)),               # Wo (bf16)
            pl.BlockSpec((C, 1), lambda i: (0, 0)),               # bo
        ],
        out_specs=pl.BlockSpec((None, C, N), lambda i: (i, 0, 0)),
        compiler_params=pltpu.CompilerParams(
            dimension_semantics=("parallel",)),                    # B=2 -> both v7x TCs
    )(x_pad, masks, wconv, bconv, gamma, beta, w_in, b_in, wo, bo)

    # Output already in (B, C, N) token order == (B, C, H, W) flattened.
    # dropout(p=0.0) -> identity.
    return out.reshape(B, C, H, W)


# ----------------------------------------------------------------------------
# Pure-JAX reference (same math, f32 end-to-end) for correctness checking.
# ----------------------------------------------------------------------------
def _reference_forward(x_nchw, p):
    B, C, H, W = x_nchw.shape
    x = jnp.transpose(x_nchw, (0, 2, 3, 1))

    def proj(w, b, g, be):
        xp = jnp.pad(x, ((0, 0), (1, 1), (1, 1), (0, 0)))
        acc = jnp.zeros((B, H, W, C), jnp.float32)
        for di in range(3):
            for dj in range(3):
                acc = acc + xp[:, di:di + H, dj:dj + W, :] * w[di, dj, :]
        acc = jnp.maximum(acc + b, 0.0)
        mean = jnp.mean(acc, axis=-1, keepdims=True)
        var = jnp.mean((acc - mean) ** 2, axis=-1, keepdims=True)
        return ((acc - mean) * jax.lax.rsqrt(var + 1e-5)) * g + be

    q = proj(p["wq_conv"], p["bq_conv"], p["gq"], p["betaq"]).reshape(B, H * W, C)
    k = proj(p["wk_conv"], p["bk_conv"], p["gk"], p["betak"]).reshape(B, H * W, C)
    v = proj(p["wv_conv"], p["bv_conv"], p["gv"], p["betav"]).reshape(B, H * W, C)

    qp = q @ p["Wq"].T + p["bq"]
    kp = k @ p["Wk"].T + p["bk"]
    vp = v @ p["Wv"].T + p["bv"]
    s = (qp / jnp.sqrt(jnp.float32(C))) @ jnp.swapaxes(kp, -1, -2)
    a = jax.nn.softmax(s, axis=-1)
    out = a @ vp
    out = out @ p["Wo"].T + p["bo"]
    return jnp.transpose(out, (0, 2, 1)).reshape(B, C, H, W)


if __name__ == "__main__":
    B, C, H, W = 2, 4, 16, 16
    key = jax.random.PRNGKey(0)
    ks = jax.random.split(key, 24)

    x = jax.random.normal(ks[0], (B, C, H, W), jnp.float32)

    def n(k, shape, scale=0.2):
        return (scale * jax.random.normal(k, shape)).astype(jnp.float32)

    params = {
        # depthwise conv (PyTorch weight (C,1,3,3) stored here as (3,3,C)) + bias
        "wq_conv": n(ks[1], (3, 3, C)), "bq_conv": n(ks[2], (C,)),
        "wk_conv": n(ks[3], (3, 3, C)), "bk_conv": n(ks[4], (C,)),
        "wv_conv": n(ks[5], (3, 3, C)), "bv_conv": n(ks[6], (C,)),
        # LayerNorm affine params
        "gq": 1.0 + n(ks[7], (C,), 0.05), "betaq": n(ks[8], (C,), 0.05),
        "gk": 1.0 + n(ks[9], (C,), 0.05), "betak": n(ks[10], (C,), 0.05),
        "gv": 1.0 + n(ks[11], (C,), 0.05), "betav": n(ks[12], (C,), 0.05),
        # MultiheadAttention (num_heads=1): in-proj slices + out-proj
        "Wq": n(ks[13], (C, C)), "bq": n(ks[14], (C,)),
        "Wk": n(ks[15], (C, C)), "bk": n(ks[16], (C,)),
        "Wv": n(ks[17], (C, C)), "bv": n(ks[18], (C,)),
        "Wo": n(ks[19], (C, C)), "bo": n(ks[20], (C,)),
    }

    fwd = jax.jit(attention_forward)
    out = jax.block_until_ready(fwd(x, params))

    ref = _reference_forward(x, params)
    assert out.shape == (B, C, H, W)
    max_err = float(jnp.max(jnp.abs(out - ref)))
    # Tolerance re-baselined for bf16 MXU operands (f32 accumulation); the
    # softmax reciprocal itself is exact.
    assert jnp.allclose(out, ref, rtol=3e-2, atol=3e-2), \
        f"mismatch vs reference (max abs err {max_err})"

    print("KERNEL_OK")
</pallas_src>

<mosaic_0001>
module attributes {stable_mosaic.version = 11 : i64} {
  func.func @_fused_attention_kernel(%arg0: i32, %arg1: memref<1x4x290xf32, #tpu.memory_space<vmem>>, %arg2: memref<2x256xf32, #tpu.memory_space<vmem>>, %arg3: memref<3x4x9xf32, #tpu.memory_space<vmem>>, %arg4: memref<3x4x1xf32, #tpu.memory_space<vmem>>, %arg5: memref<3x4x1xf32, #tpu.memory_space<vmem>>, %arg6: memref<3x4x1xf32, #tpu.memory_space<vmem>>, %arg7: memref<3x4x4xbf16, #tpu.memory_space<vmem>>, %arg8: memref<3x4x1xf32, #tpu.memory_space<vmem>>, %arg9: memref<4x4xbf16, #tpu.memory_space<vmem>>, %arg10: memref<4x1xf32, #tpu.memory_space<vmem>>, %arg11: memref<1x4x256xf32, #tpu.memory_space<vmem>>) attributes {dimension_semantics = [#tpu.dimension_semantics<parallel>], iteration_bounds = array<i64: 2>, scalar_prefetch = 0 : i64, scratch_operands = 0 : i64, tpu.core_type = #tpu.core_type<tc>, window_params = [{transform_indices = @transform_0, window_bounds = array<i64: 1, 4, 290>}, {pipeline_mode = #tpu.pipeline_mode<synchronous>, transform_indices = @transform_1, window_bounds = array<i64: 2, 256>}, {pipeline_mode = #tpu.pipeline_mode<synchronous>, transform_indices = @transform_2, window_bounds = array<i64: 3, 4, 9>}, {pipeline_mode = #tpu.pipeline_mode<synchronous>, transform_indices = @transform_3, window_bounds = array<i64: 3, 4, 1>}, {pipeline_mode = #tpu.pipeline_mode<synchronous>, transform_indices = @transform_4, window_bounds = array<i64: 3, 4, 1>}, {pipeline_mode = #tpu.pipeline_mode<synchronous>, transform_indices = @transform_5, window_bounds = array<i64: 3, 4, 1>}, {pipeline_mode = #tpu.pipeline_mode<synchronous>, transform_indices = @transform_6, window_bounds = array<i64: 3, 4, 4>}, {pipeline_mode = #tpu.pipeline_mode<synchronous>, transform_indices = @transform_7, window_bounds = array<i64: 3, 4, 1>}, {pipeline_mode = #tpu.pipeline_mode<synchronous>, transform_indices = @transform_8, window_bounds = array<i64: 4, 4>}, {pipeline_mode = #tpu.pipeline_mode<synchronous>, transform_indices = @transform_9, window_bounds = array<i64: 4, 1>}, {transform_indices = @transform_10, window_bounds = array<i64: 1, 4, 256>}]} {
    %c0 = arith.constant 0 : index
    %c0_0 = arith.constant 0 : index
    %c0_1 = arith.constant 0 : index
    %0 = vector.load %arg1[%c0, %c0_0, %c0_1] : memref<1x4x290xf32, #tpu.memory_space<vmem>>, vector<1x4x290xf32>
    %1 = vector.shape_cast %0 : vector<1x4x290xf32> to vector<4x290xf32>
    %c0_2 = arith.constant 0 : index
    %c0_3 = arith.constant 0 : index
    %2 = vector.load %arg2[%c0_2, %c0_3] : memref<2x256xf32, #tpu.memory_space<vmem>>, vector<1x256xf32>
    %c1 = arith.constant 1 : index
    %c0_4 = arith.constant 0 : index
    %3 = vector.load %arg2[%c1, %c0_4] : memref<2x256xf32, #tpu.memory_space<vmem>>, vector<1x256xf32>
    %c0_5 = arith.constant 0 : index
    %c0_6 = arith.constant 0 : index
    %c0_7 = arith.constant 0 : index
    %4 = vector.load %arg3[%c0_5, %c0_6, %c0_7] : memref<3x4x9xf32, #tpu.memory_space<vmem>>, vector<1x4x9xf32>
    %5 = vector.shape_cast %4 : vector<1x4x9xf32> to vector<4x9xf32>
    %c1_8 = arith.constant 1 : index
    %c0_9 = arith.constant 0 : index
    %c0_10 = arith.constant 0 : index
    %6 = vector.load %arg3[%c1_8, %c0_9, %c0_10] : memref<3x4x9xf32, #tpu.memory_space<vmem>>, vector<1x4x9xf32>
    %7 = vector.shape_cast %6 : vector<1x4x9xf32> to vector<4x9xf32>
    %c2 = arith.constant 2 : index
    %c0_11 = arith.constant 0 : index
    %c0_12 = arith.constant 0 : index
    %8 = vector.load %arg3[%c2, %c0_11, %c0_12] : memref<3x4x9xf32, #tpu.memory_space<vmem>>, vector<1x4x9xf32>
    %9 = vector.shape_cast %8 : vector<1x4x9xf32> to vector<4x9xf32>
    %cst = arith.constant 0.000000e+00 : f32
    %10 = vector.broadcast %cst : f32 to vector<4x256xf32>
    %cst_13 = arith.constant 0.000000e+00 : f32
    %11 = vector.broadcast %cst_13 : f32 to vector<4x256xf32>
    %cst_14 = arith.constant 0.000000e+00 : f32
    %12 = vector.broadcast %cst_14 : f32 to vector<4x256xf32>
    %13 = vector.extract_strided_slice %1 {offsets = [0, 0], sizes = [4, 256], strides = [1, 1]} : vector<4x290xf32> to vector<4x256xf32>
    %14 = vector.broadcast %2 : vector<1x256xf32> to vector<4x256xf32>
    %15 = arith.mulf %13, %14 : vector<4x256xf32>
    %16 = vector.extract_strided_slice %5 {offsets = [0, 0], sizes = [4, 1], strides = [1, 1]} : vector<4x9xf32> to vector<4x1xf32>
    %17 = vector.broadcast %16 : vector<4x1xf32> to vector<4x256xf32>
    %18 = arith.mulf %15, %17 : vector<4x256xf32>
    %19 = arith.addf %10, %18 : vector<4x256xf32>
    %20 = vector.extract_strided_slice %7 {offsets = [0, 0], sizes = [4, 1], strides = [1, 1]} : vector<4x9xf32> to vector<4x1xf32>
    %21 = vector.broadcast %20 : vector<4x1xf32> to vector<4x256xf32>
    %22 = arith.mulf %15, %21 : vector<4x256xf32>
    %23 = arith.addf %11, %22 : vector<4x256xf32>
    %24 = vector.extract_strided_slice %9 {offsets = [0, 0], sizes = [4, 1], strides = [1, 1]} : vector<4x9xf32> to vector<4x1xf32>
    %25 = vector.broadcast %24 : vector<4x1xf32> to vector<4x256xf32>
    %26 = arith.mulf %15, %25 : vector<4x256xf32>
    %27 = arith.addf %12, %26 : vector<4x256xf32>
    %28 = vector.extract_strided_slice %1 {offsets = [0, 1], sizes = [4, 256], strides = [1, 1]} : vector<4x290xf32> to vector<4x256xf32>
    %29 = vector.extract_strided_slice %5 {offsets = [0, 1], sizes = [4, 1], strides = [1, 1]} : vector<4x9xf32> to vector<4x1xf32>
    %30 = vector.broadcast %29 : vector<4x1xf32> to vector<4x256xf32>
    %31 = arith.mulf %28, %30 : vector<4x256xf32>
    %32 = arith.addf %19, %31 : vector<4x256xf32>
    %33 = vector.extract_strided_slice %7 {offsets = [0, 1], sizes = [4, 1], strides = [1, 1]} : vector<4x9xf32> to vector<4x1xf32>
    %34 = vector.broadcast %33 : vector<4x1xf32> to vector<4x256xf32>
    %35 = arith.mulf %28, %34 : vector<4x256xf32>
    %36 = arith.addf %23, %35 : vector<4x256xf32>
    %37 = vector.extract_strided_slice %9 {offsets = [0, 1], sizes = [4, 1], strides = [1, 1]} : vector<4x9xf32> to vector<4x1xf32>
    %38 = vector.broadcast %37 : vector<4x1xf32> to vector<4x256xf32>
    %39 = arith.mulf %28, %38 : vector<4x256xf32>
    %40 = arith.addf %27, %39 : vector<4x256xf32>
    %41 = vector.extract_strided_slice %1 {offsets = [0, 2], sizes = [4, 256], strides = [1, 1]} : vector<4x290xf32> to vector<4x256xf32>
    %42 = vector.broadcast %3 : vector<1x256xf32> to vector<4x256xf32>
    %43 = arith.mulf %41, %42 : vector<4x256xf32>
    %44 = vector.extract_strided_slice %5 {offsets = [0, 2], sizes = [4, 1], strides = [1, 1]} : vector<4x9xf32> to vector<4x1xf32>
    %45 = vector.broadcast %44 : vector<4x1xf32> to vector<4x256xf32>
    %46 = arith.mulf %43, %45 : vector<4x256xf32>
    %47 = arith.addf %32, %46 : vector<4x256xf32>
    %48 = vector.extract_strided_slice %7 {offsets = [0, 2], sizes = [4, 1], strides = [1, 1]} : vector<4x9xf32> to vector<4x1xf32>
    %49 = vector.broadcast %48 : vector<4x1xf32> to vector<4x256xf32>
    %50 = arith.mulf %43, %49 : vector<4x256xf32>
    %51 = arith.addf %36, %50 : vector<4x256xf32>
    %52 = vector.extract_strided_slice %9 {offsets = [0, 2], sizes = [4, 1], strides = [1, 1]} : vector<4x9xf32> to vector<4x1xf32>
    %53 = vector.broadcast %52 : vector<4x1xf32> to vector<4x256xf32>
    %54 = arith.mulf %43, %53 : vector<4x256xf32>
    %55 = arith.addf %40, %54 : vector<4x256xf32>
    %56 = vector.extract_strided_slice %1 {offsets = [0, 16], sizes = [4, 256], strides = [1, 1]} : vector<4x290xf32> to vector<4x256xf32>
    %57 = vector.broadcast %2 : vector<1x256xf32> to vector<4x256xf32>
    %58 = arith.mulf %56, %57 : vector<4x256xf32>
    %59 = vector.extract_strided_slice %5 {offsets = [0, 3], sizes = [4, 1], strides = [1, 1]} : vector<4x9xf32> to vector<4x1xf32>
    %60 = vector.broadcast %59 : vector<4x1xf32> to vector<4x256xf32>
    %61 = arith.mulf %58, %60 : vector<4x256xf32>
    %62 = arith.addf %47, %61 : vector<4x256xf32>
    %63 = vector.extract_strided_slice %7 {offsets = [0, 3], sizes = [4, 1], strides = [1, 1]} : vector<4x9xf32> to vector<4x1xf32>
    %64 = vector.broadcast %63 : vector<4x1xf32> to vector<4x256xf32>
    %65 = arith.mulf %58, %64 : vector<4x256xf32>
    %66 = arith.addf %51, %65 : vector<4x256xf32>
    %67 = vector.extract_strided_slice %9 {offsets = [0, 3], sizes = [4, 1], strides = [1, 1]} : vector<4x9xf32> to vector<4x1xf32>
    %68 = vector.broadcast %67 : vector<4x1xf32> to vector<4x256xf32>
    %69 = arith.mulf %58, %68 : vector<4x256xf32>
    %70 = arith.addf %55, %69 : vector<4x256xf32>
    %71 = vector.extract_strided_slice %1 {offsets = [0, 17], sizes = [4, 256], strides = [1, 1]} : vector<4x290xf32> to vector<4x256xf32>
    %72 = vector.extract_strided_slice %5 {offsets = [0, 4], sizes = [4, 1], strides = [1, 1]} : vector<4x9xf32> to vector<4x1xf32>
    %73 = vector.broadcast %72 : vector<4x1xf32> to vector<4x256xf32>
    %74 = arith.mulf %71, %73 : vector<4x256xf32>
    %75 = arith.addf %62, %74 : vector<4x256xf32>
    %76 = vector.extract_strided_slice %7 {offsets = [0, 4], sizes = [4, 1], strides = [1, 1]} : vector<4x9xf32> to vector<4x1xf32>
    %77 = vector.broadcast %76 : vector<4x1xf32> to vector<4x256xf32>
    %78 = arith.mulf %71, %77 : vector<4x256xf32>
    %79 = arith.addf %66, %78 : vector<4x256xf32>
    %80 = vector.extract_strided_slice %9 {offsets = [0, 4], sizes = [4, 1], strides = [1, 1]} : vector<4x9xf32> to vector<4x1xf32>
    %81 = vector.broadcast %80 : vector<4x1xf32> to vector<4x256xf32>
    %82 = arith.mulf %71, %81 : vector<4x256xf32>
    %83 = arith.addf %70, %82 : vector<4x256xf32>
    %84 = vector.extract_strided_slice %1 {offsets = [0, 18], sizes = [4, 256], strides = [1, 1]} : vector<4x290xf32> to vector<4x256xf32>
    %85 = vector.broadcast %3 : vector<1x256xf32> to vector<4x256xf32>
    %86 = arith.mulf %84, %85 : vector<4x256xf32>
    %87 = vector.extract_strided_slice %5 {offsets = [0, 5], sizes = [4, 1], strides = [1, 1]} : vector<4x9xf32> to vector<4x1xf32>
    %88 = vector.broadcast %87 : vector<4x1xf32> to vector<4x256xf32>
    %89 = arith.mulf %86, %88 : vector<4x256xf32>
    %90 = arith.addf %75, %89 : vector<4x256xf32>
    %91 = vector.extract_strided_slice %7 {offsets = [0, 5], sizes = [4, 1], strides = [1, 1]} : vector<4x9xf32> to vector<4x1xf32>
    %92 = vector.broadcast %91 : vector<4x1xf32> to vector<4x256xf32>
    %93 = arith.mulf %86, %92 : vector<4x256xf32>
    %94 = arith.addf %79, %93 : vector<4x256xf32>
    %95 = vector.extract_strided_slice %9 {offsets = [0, 5], sizes = [4, 1], strides = [1, 1]} : vector<4x9xf32> to vector<4x1xf32>
    %96 = vector.broadcast %95 : vector<4x1xf32> to vector<4x256xf32>
    %97 = arith.mulf %86, %96 : vector<4x256xf32>
    %98 = arith.addf %83, %97 : vector<4x256xf32>
    %99 = vector.extract_strided_slice %1 {offsets = [0, 32], sizes = [4, 256], strides = [1, 1]} : vector<4x290xf32> to vector<4x256xf32>
    %100 = vector.broadcast %2 : vector<1x256xf32> to vector<4x256xf32>
    %101 = arith.mulf %99, %100 : vector<4x256xf32>
    %102 = vector.extract_strided_slice %5 {offsets = [0, 6], sizes = [4, 1], strides = [1, 1]} : vector<4x9xf32> to vector<4x1xf32>
    %103 = vector.broadcast %102 : vector<4x1xf32> to vector<4x256xf32>
    %104 = arith.mulf %101, %103 : vector<4x256xf32>
    %105 = arith.addf %90, %104 : vector<4x256xf32>
    %106 = vector.extract_strided_slice %7 {offsets = [0, 6], sizes = [4, 1], strides = [1, 1]} : vector<4x9xf32> to vector<4x1xf32>
    %107 = vector.broadcast %106 : vector<4x1xf32> to vector<4x256xf32>
    %108 = arith.mulf %101, %107 : vector<4x256xf32>
    %109 = arith.addf %94, %108 : vector<4x256xf32>
    %110 = vector.extract_strided_slice %9 {offsets = [0, 6], sizes = [4, 1], strides = [1, 1]} : vector<4x9xf32> to vector<4x1xf32>
    %111 = vector.broadcast %110 : vector<4x1xf32> to vector<4x256xf32>
    %112 = arith.mulf %101, %111 : vector<4x256xf32>
    %113 = arith.addf %98, %112 : vector<4x256xf32>
    %114 = vector.extract_strided_slice %1 {offsets = [0, 33], sizes = [4, 256], strides = [1, 1]} : vector<4x290xf32> to vector<4x256xf32>
    %115 = vector.extract_strided_slice %5 {offsets = [0, 7], sizes = [4, 1], strides = [1, 1]} : vector<4x9xf32> to vector<4x1xf32>
    %116 = vector.broadcast %115 : vector<4x1xf32> to vector<4x256xf32>
    %117 = arith.mulf %114, %116 : vector<4x256xf32>
    %118 = arith.addf %105, %117 : vector<4x256xf32>
    %119 = vector.extract_strided_slice %7 {offsets = [0, 7], sizes = [4, 1], strides = [1, 1]} : vector<4x9xf32> to vector<4x1xf32>
    %120 = vector.broadcast %119 : vector<4x1xf32> to vector<4x256xf32>
    %121 = arith.mulf %114, %120 : vector<4x256xf32>
    %122 = arith.addf %109, %121 : vector<4x256xf32>
    %123 = vector.extract_strided_slice %9 {offsets = [0, 7], sizes = [4, 1], strides = [1, 1]} : vector<4x9xf32> to vector<4x1xf32>
    %124 = vector.broadcast %123 : vector<4x1xf32> to vector<4x256xf32>
    %125 = arith.mulf %114, %124 : vector<4x256xf32>
    %126 = arith.addf %113, %125 : vector<4x256xf32>
    %127 = vector.extract_strided_slice %1 {offsets = [0, 34], sizes = [4, 256], strides = [1, 1]} : vector<4x290xf32> to vector<4x256xf32>
    %128 = vector.broadcast %3 : vector<1x256xf32> to vector<4x256xf32>
    %129 = arith.mulf %127, %128 : vector<4x256xf32>
    %130 = vector.extract_strided_slice %5 {offsets = [0, 8], sizes = [4, 1], strides = [1, 1]} : vector<4x9xf32> to vector<4x1xf32>
    %131 = vector.broadcast %130 : vector<4x1xf32> to vector<4x256xf32>
    %132 = arith.mulf %129, %131 : vector<4x256xf32>
    %133 = arith.addf %118, %132 : vector<4x256xf32>
    %134 = vector.extract_strided_slice %7 {offsets = [0, 8], sizes = [4, 1], strides = [1, 1]} : vector<4x9xf32> to vector<4x1xf32>
    %135 = vector.broadcast %134 : vector<4x1xf32> to vector<4x256xf32>
    %136 = arith.mulf %129, %135 : vector<4x256xf32>
    %137 = arith.addf %122, %136 : vector<4x256xf32>
    %138 = vector.extract_strided_slice %9 {offsets = [0, 8], sizes = [4, 1], strides = [1, 1]} : vector<4x9xf32> to vector<4x1xf32>
    %139 = vector.broadcast %138 : vector<4x1xf32> to vector<4x256xf32>
    %140 = arith.mulf %129, %139 : vector<4x256xf32>
    %141 = arith.addf %126, %140 : vector<4x256xf32>
    %c0_15 = arith.constant 0 : index
    %c0_16 = arith.constant 0 : index
    %c0_17 = arith.constant 0 : index
    %142 = vector.load %arg4[%c0_15, %c0_16, %c0_17] : memref<3x4x1xf32, #tpu.memory_space<vmem>>, vector<1x4x1xf32>
    %143 = vector.shape_cast %142 : vector<1x4x1xf32> to vector<4x1xf32>
    %144 = vector.broadcast %143 : vector<4x1xf32> to vector<4x256xf32>
    %145 = arith.addf %133, %144 : vector<4x256xf32>
    %cst_18 = arith.constant 0.000000e+00 : f32
    %146 = vector.broadcast %cst_18 : f32 to vector<4x256xf32>
    %147 = arith.maximumf %145, %146 : vector<4x256xf32>
    %cst_19 = arith.constant dense<0.000000e+00> : vector<256xf32>
    %148 = vector.multi_reduction <add>, %147, %cst_19 [0] : vector<4x256xf32> to vector<256xf32>
    %149 = vector.shape_cast %148 : vector<256xf32> to vector<1x256xf32>
    %cst_20 = arith.constant 4.000000e+00 : f32
    %150 = vector.broadcast %cst_20 : f32 to vector<1x256xf32>
    %151 = arith.divf %149, %150 : vector<1x256xf32>
    %152 = vector.broadcast %151 : vector<1x256xf32> to vector<4x256xf32>
    %153 = arith.subf %147, %152 : vector<4x256xf32>
    %154 = arith.mulf %153, %153 : vector<4x256xf32>
    %cst_21 = arith.constant dense<0.000000e+00> : vector<256xf32>
    %155 = vector.multi_reduction <add>, %154, %cst_21 [0] : vector<4x256xf32> to vector<256xf32>
    %156 = vector.shape_cast %155 : vector<256xf32> to vector<1x256xf32>
    %cst_22 = arith.constant 4.000000e+00 : f32
    %157 = vector.broadcast %cst_22 : f32 to vector<1x256xf32>
    %158 = arith.divf %156, %157 : vector<1x256xf32>
    %159 = vector.broadcast %151 : vector<1x256xf32> to vector<4x256xf32>
    %160 = arith.subf %147, %159 : vector<4x256xf32>
    %cst_23 = arith.constant 9.99999974E-6 : f32
    %161 = vector.broadcast %cst_23 : f32 to vector<1x256xf32>
    %162 = arith.addf %158, %161 : vector<1x256xf32>
    %163 = math.rsqrt %162 : vector<1x256xf32>
    %164 = vector.broadcast %163 : vector<1x256xf32> to vector<4x256xf32>
    %165 = arith.mulf %160, %164 : vector<4x256xf32>
    %c0_24 = arith.constant 0 : index
    %c0_25 = arith.constant 0 : index
    %c0_26 = arith.constant 0 : index
    %166 = vector.load %arg5[%c0_24, %c0_25, %c0_26] : memref<3x4x1xf32, #tpu.memory_space<vmem>>, vector<1x4x1xf32>
    %167 = vector.shape_cast %166 : vector<1x4x1xf32> to vector<4x1xf32>
    %168 = vector.broadcast %167 : vector<4x1xf32> to vector<4x256xf32>
    %169 = arith.mulf %165, %168 : vector<4x256xf32>
    %c0_27 = arith.constant 0 : index
    %c0_28 = arith.constant 0 : index
    %c0_29 = arith.constant 0 : index
    %170 = vector.load %arg6[%c0_27, %c0_28, %c0_29] : memref<3x4x1xf32, #tpu.memory_space<vmem>>, vector<1x4x1xf32>
    %171 = vector.shape_cast %170 : vector<1x4x1xf32> to vector<4x1xf32>
    %172 = vector.broadcast %171 : vector<4x1xf32> to vector<4x256xf32>
    %173 = arith.addf %169, %172 : vector<4x256xf32>
    %174 = arith.truncf %173 : vector<4x256xf32> to vector<4x256xbf16>
    %c1_30 = arith.constant 1 : index
    %c0_31 = arith.constant 0 : index
    %c0_32 = arith.constant 0 : index
    %175 = vector.load %arg4[%c1_30, %c0_31, %c0_32] : memref<3x4x1xf32, #tpu.memory_space<vmem>>, vector<1x4x1xf32>
    %176 = vector.shape_cast %175 : vector<1x4x1xf32> to vector<4x1xf32>
    %177 = vector.broadcast %176 : vector<4x1xf32> to vector<4x256xf32>
    %178 = arith.addf %137, %177 : vector<4x256xf32>
    %cst_33 = arith.constant 0.000000e+00 : f32
    %179 = vector.broadcast %cst_33 : f32 to vector<4x256xf32>
    %180 = arith.maximumf %178, %179 : vector<4x256xf32>
    %cst_34 = arith.constant dense<0.000000e+00> : vector<256xf32>
    %181 = vector.multi_reduction <add>, %180, %cst_34 [0] : vector<4x256xf32> to vector<256xf32>
    %182 = vector.shape_cast %181 : vector<256xf32> to vector<1x256xf32>
    %cst_35 = arith.constant 4.000000e+00 : f32
    %183 = vector.broadcast %cst_35 : f32 to vector<1x256xf32>
    %184 = arith.divf %182, %183 : vector<1x256xf32>
    %185 = vector.broadcast %184 : vector<1x256xf32> to vector<4x256xf32>
    %186 = arith.subf %180, %185 : vector<4x256xf32>
    %187 = arith.mulf %186, %186 : vector<4x256xf32>
    %cst_36 = arith.constant dense<0.000000e+00> : vector<256xf32>
    %188 = vector.multi_reduction <add>, %187, %cst_36 [0] : vector<4x256xf32> to vector<256xf32>
    %189 = vector.shape_cast %188 : vector<256xf32> to vector<1x256xf32>
    %cst_37 = arith.constant 4.000000e+00 : f32
    %190 = vector.broadcast %cst_37 : f32 to vector<1x256xf32>
    %191 = arith.divf %189, %190 : vector<1x256xf32>
    %192 = vector.broadcast %184 : vector<1x256xf32> to vector<4x256xf32>
    %193 = arith.subf %180, %192 : vector<4x256xf32>
    %cst_38 = arith.constant 9.99999974E-6 : f32
    %194 = vector.broadcast %cst_38 : f32 to vector<1x256xf32>
    %195 = arith.addf %191, %194 : vector<1x256xf32>
    %196 = math.rsqrt %195 : vector<1x256xf32>
    %197 = vector.broadcast %196 : vector<1x256xf32> to vector<4x256xf32>
    %198 = arith.mulf %193, %197 : vector<4x256xf32>
    %c1_39 = arith.constant 1 : index
    %c0_40 = arith.constant 0 : index
    %c0_41 = arith.constant 0 : index
    %199 = vector.load %arg5[%c1_39, %c0_40, %c0_41] : memref<3x4x1xf32, #tpu.memory_space<vmem>>, vector<1x4x1xf32>
    %200 = vector.shape_cast %199 : vector<1x4x1xf32> to vector<4x1xf32>
    %201 = vector.broadcast %200 : vector<4x1xf32> to vector<4x256xf32>
    %202 = arith.mulf %198, %201 : vector<4x256xf32>
    %c1_42 = arith.constant 1 : index
    %c0_43 = arith.constant 0 : index
    %c0_44 = arith.constant 0 : index
    %203 = vector.load %arg6[%c1_42, %c0_43, %c0_44] : memref<3x4x1xf32, #tpu.memory_space<vmem>>, vector<1x4x1xf32>
    %204 = vector.shape_cast %203 : vector<1x4x1xf32> to vector<4x1xf32>
    %205 = vector.broadcast %204 : vector<4x1xf32> to vector<4x256xf32>
    %206 = arith.addf %202, %205 : vector<4x256xf32>
    %207 = arith.truncf %206 : vector<4x256xf32> to vector<4x256xbf16>
    %c2_45 = arith.constant 2 : index
    %c0_46 = arith.constant 0 : index
    %c0_47 = arith.constant 0 : index
    %208 = vector.load %arg4[%c2_45, %c0_46, %c0_47] : memref<3x4x1xf32, #tpu.memory_space<vmem>>, vector<1x4x1xf32>
    %209 = vector.shape_cast %208 : vector<1x4x1xf32> to vector<4x1xf32>
    %210 = vector.broadcast %209 : vector<4x1xf32> to vector<4x256xf32>
    %211 = arith.addf %141, %210 : vector<4x256xf32>
    %cst_48 = arith.constant 0.000000e+00 : f32
    %212 = vector.broadcast %cst_48 : f32 to vector<4x256xf32>
    %213 = arith.maximumf %211, %212 : vector<4x256xf32>
    %cst_49 = arith.constant dense<0.000000e+00> : vector<256xf32>
    %214 = vector.multi_reduction <add>, %213, %cst_49 [0] : vector<4x256xf32> to vector<256xf32>
    %215 = vector.shape_cast %214 : vector<256xf32> to vector<1x256xf32>
    %cst_50 = arith.constant 4.000000e+00 : f32
    %216 = vector.broadcast %cst_50 : f32 to vector<1x256xf32>
    %217 = arith.divf %215, %216 : vector<1x256xf32>
    %218 = vector.broadcast %217 : vector<1x256xf32> to vector<4x256xf32>
    %219 = arith.subf %213, %218 : vector<4x256xf32>
    %220 = arith.mulf %219, %219 : vector<4x256xf32>
    %cst_51 = arith.constant dense<0.000000e+00> : vector<256xf32>
    %221 = vector.multi_reduction <add>, %220, %cst_51 [0] : vector<4x256xf32> to vector<256xf32>
    %222 = vector.shape_cast %221 : vector<256xf32> to vector<1x256xf32>
    %cst_52 = arith.constant 4.000000e+00 : f32
    %223 = vector.broadcast %cst_52 : f32 to vector<1x256xf32>
    %224 = arith.divf %222, %223 : vector<1x256xf32>
    %225 = vector.broadcast %217 : vector<1x256xf32> to vector<4x256xf32>
    %226 = arith.subf %213, %225 : vector<4x256xf32>
    %cst_53 = arith.constant 9.99999974E-6 : f32
    %227 = vector.broadcast %cst_53 : f32 to vector<1x256xf32>
    %228 = arith.addf %224, %227 : vector<1x256xf32>
    %229 = math.rsqrt %228 : vector<1x256xf32>
    %230 = vector.broadcast %229 : vector<1x256xf32> to vector<4x256xf32>
    %231 = arith.mulf %226, %230 : vector<4x256xf32>
    %c2_54 = arith.constant 2 : index
    %c0_55 = arith.constant 0 : index
    %c0_56 = arith.constant 0 : index
    %232 = vector.load %arg5[%c2_54, %c0_55, %c0_56] : memref<3x4x1xf32, #tpu.memory_space<vmem>>, vector<1x4x1xf32>
    %233 = vector.shape_cast %232 : vector<1x4x1xf32> to vector<4x1xf32>
    %234 = vector.broadcast %233 : vector<4x1xf32> to vector<4x256xf32>
    %235 = arith.mulf %231, %234 : vector<4x256xf32>
    %c2_57 = arith.constant 2 : index
    %c0_58 = arith.constant 0 : index
    %c0_59 = arith.constant 0 : index
    %236 = vector.load %arg6[%c2_57, %c0_58, %c0_59] : memref<3x4x1xf32, #tpu.memory_space<vmem>>, vector<1x4x1xf32>
    %237 = vector.shape_cast %236 : vector<1x4x1xf32> to vector<4x1xf32>
    %238 = vector.broadcast %237 : vector<4x1xf32> to vector<4x256xf32>
    %239 = arith.addf %235, %238 : vector<4x256xf32>
    %240 = arith.truncf %239 : vector<4x256xf32> to vector<4x256xbf16>
    %c0_60 = arith.constant 0 : index
    %c0_61 = arith.constant 0 : index
    %c0_62 = arith.constant 0 : index
    %241 = vector.load %arg7[%c0_60, %c0_61, %c0_62] : memref<3x4x4xbf16, #tpu.memory_space<vmem>>, vector<1x4x4xbf16>
    %242 = vector.shape_cast %241 : vector<1x4x4xbf16> to vector<4x4xbf16>
    %cst_63 = arith.constant dense<0.000000e+00> : vector<4x256xf32>
    %243 = tpu.matmul %242, %174, %cst_63 {dimension_numbers = #tpu.dot_dimension_numbers<[1], [0], [0], [1], [0, 0, 1, 1], [], []>} : vector<4x4xbf16>, vector<4x256xbf16>, vector<4x256xf32> -> vector<4x256xf32>
    %c0_64 = arith.constant 0 : index
    %c0_65 = arith.constant 0 : index
    %c0_66 = arith.constant 0 : index
    %244 = vector.load %arg8[%c0_64, %c0_65, %c0_66] : memref<3x4x1xf32, #tpu.memory_space<vmem>>, vector<1x4x1xf32>
    %245 = vector.shape_cast %244 : vector<1x4x1xf32> to vector<4x1xf32>
    %246 = vector.broadcast %245 : vector<4x1xf32> to vector<4x256xf32>
    %247 = arith.addf %243, %246 : vector<4x256xf32>
    %248 = arith.truncf %247 : vector<4x256xf32> to vector<4x256xbf16>
    %c1_67 = arith.constant 1 : index
    %c0_68 = arith.constant 0 : index
    %c0_69 = arith.constant 0 : index
    %249 = vector.load %arg7[%c1_67, %c0_68, %c0_69] : memref<3x4x4xbf16, #tpu.memory_space<vmem>>, vector<1x4x4xbf16>
    %250 = vector.shape_cast %249 : vector<1x4x4xbf16> to vector<4x4xbf16>
    %cst_70 = arith.constant dense<0.000000e+00> : vector<4x256xf32>
    %251 = tpu.matmul %250, %207, %cst_70 {dimension_numbers = #tpu.dot_dimension_numbers<[1], [0], [0], [1], [0, 0, 1, 1], [], []>} : vector<4x4xbf16>, vector<4x256xbf16>, vector<4x256xf32> -> vector<4x256xf32>
    %c1_71 = arith.constant 1 : index
    %c0_72 = arith.constant 0 : index
    %c0_73 = arith.constant 0 : index
    %252 = vector.load %arg8[%c1_71, %c0_72, %c0_73] : memref<3x4x1xf32, #tpu.memory_space<vmem>>, vector<1x4x1xf32>
    %253 = vector.shape_cast %252 : vector<1x4x1xf32> to vector<4x1xf32>
    %254 = vector.broadcast %253 : vector<4x1xf32> to vector<4x256xf32>
    %255 = arith.addf %251, %254 : vector<4x256xf32>
    %256 = arith.truncf %255 : vector<4x256xf32> to vector<4x256xbf16>
    %c2_74 = arith.constant 2 : index
    %c0_75 = arith.constant 0 : index
    %c0_76 = arith.constant 0 : index
    %257 = vector.load %arg7[%c2_74, %c0_75, %c0_76] : memref<3x4x4xbf16, #tpu.memory_space<vmem>>, vector<1x4x4xbf16>
    %258 = vector.shape_cast %257 : vector<1x4x4xbf16> to vector<4x4xbf16>
    %cst_77 = arith.constant dense<0.000000e+00> : vector<4x256xf32>
    %259 = tpu.matmul %258, %240, %cst_77 {dimension_numbers = #tpu.dot_dimension_numbers<[1], [0], [0], [1], [0, 0, 1, 1], [], []>} : vector<4x4xbf16>, vector<4x256xbf16>, vector<4x256xf32> -> vector<4x256xf32>
    %c2_78 = arith.constant 2 : index
    %c0_79 = arith.constant 0 : index
    %c0_80 = arith.constant 0 : index
    %260 = vector.load %arg8[%c2_78, %c0_79, %c0_80] : memref<3x4x1xf32, #tpu.memory_space<vmem>>, vector<1x4x1xf32>
    %261 = vector.shape_cast %260 : vector<1x4x1xf32> to vector<4x1xf32>
    %262 = vector.broadcast %261 : vector<4x1xf32> to vector<4x256xf32>
    %263 = arith.addf %259, %262 : vector<4x256xf32>
    %264 = arith.truncf %263 : vector<4x256xf32> to vector<4x256xbf16>
    %c0_81 = arith.constant 0 : index
    %c0_82 = arith.constant 0 : index
    %265 = vector.load %arg9[%c0_81, %c0_82] : memref<4x4xbf16, #tpu.memory_space<vmem>>, vector<4x4xbf16>
    %c0_83 = arith.constant 0 : index
    %c0_84 = arith.constant 0 : index
    %266 = vector.load %arg10[%c0_83, %c0_84] : memref<4x1xf32, #tpu.memory_space<vmem>>, vector<4x1xf32>
    %267 = vector.extract_strided_slice %248 {offsets = [0, 0], sizes = [4, 128], strides = [1, 1]} : vector<4x256xbf16> to vector<4x128xbf16>
    %cst_85 = arith.constant dense<0.000000e+00> : vector<256x128xf32>
    %268 = tpu.matmul %256, %267, %cst_85 {dimension_numbers = #tpu.dot_dimension_numbers<[0], [0], [1], [1], [0, 1, 1, 1], [], []>} : vector<4x256xbf16>, vector<4x128xbf16>, vector<256x128xf32> -> vector<256x128xf32>
    %cst_86 = arith.constant dense<0xFF800000> : vector<128xf32>
    %269 = vector.multi_reduction <maximumf>, %268, %cst_86 [0] : vector<256x128xf32> to vector<128xf32>
    %270 = vector.shape_cast %269 : vector<128xf32> to vector<1x128xf32>
    %271 = vector.broadcast %270 : vector<1x128xf32> to vector<256x128xf32>
    %272 = arith.subf %268, %271 : vector<256x128xf32>
    %273 = math.exp %272 : vector<256x128xf32>
    %cst_87 = arith.constant dense<0.000000e+00> : vector<128xf32>
    %274 = vector.multi_reduction <add>, %273, %cst_87 [0] : vector<256x128xf32> to vector<128xf32>
    %275 = vector.shape_cast %274 : vector<128xf32> to vector<1x128xf32>
    %276 = arith.truncf %273 : vector<256x128xf32> to vector<256x128xbf16>
    %cst_88 = arith.constant dense<0.000000e+00> : vector<4x128xf32>
    %277 = tpu.matmul %264, %276, %cst_88 {dimension_numbers = #tpu.dot_dimension_numbers<[1], [0], [0], [1], [0, 0, 1, 1], [], []>} : vector<4x256xbf16>, vector<256x128xbf16>, vector<4x128xf32> -> vector<4x128xf32>
    %278 = arith.truncf %277 : vector<4x128xf32> to vector<4x128xbf16>
    %cst_89 = arith.constant dense<0.000000e+00> : vector<4x128xf32>
    %279 = tpu.matmul %265, %278, %cst_89 {dimension_numbers = #tpu.dot_dimension_numbers<[1], [0], [0], [1], [0, 0, 1, 1], [], []>} : vector<4x4xbf16>, vector<4x128xbf16>, vector<4x128xf32> -> vector<4x128xf32>
    %280 = tpu.reciprocal %275 : vector<1x128xf32> -> vector<1x128xf32>
    %281 = vector.broadcast %280 : vector<1x128xf32> to vector<4x128xf32>
    %282 = arith.mulf %279, %281 : vector<4x128xf32>
    %283 = vector.broadcast %266 : vector<4x1xf32> to vector<4x128xf32>
    %284 = arith.addf %282, %283 : vector<4x128xf32>
    %c0_90 = arith.constant 0 : index
    %c0_91 = arith.constant 0 : index
    %c0_92 = arith.constant 0 : index
    %285 = vector.load %arg11[%c0_90, %c0_91, %c0_92] : memref<1x4x256xf32, #tpu.memory_space<vmem>>, vector<1x4x128xf32>
    %286 = vector.shape_cast %285 : vector<1x4x128xf32> to vector<4x128xf32>
    %287 = vector.shape_cast %284 : vector<4x128xf32> to vector<1x4x128xf32>
    tpu.vector_store %arg11[%c0_90, %c0_91, %c0_92], %287 {strides = array<i32>} : memref<1x4x256xf32, #tpu.memory_space<vmem>>, vector<1x4x128xf32>,
    %288 = vector.extract_strided_slice %248 {offsets = [0, 128], sizes = [4, 128], strides = [1, 1]} : vector<4x256xbf16> to vector<4x128xbf16>
    %cst_93 = arith.constant dense<0.000000e+00> : vector<256x128xf32>
    %289 = tpu.matmul %256, %288, %cst_93 {dimension_numbers = #tpu.dot_dimension_numbers<[0], [0], [1], [1], [0, 1, 1, 1], [], []>} : vector<4x256xbf16>, vector<4x128xbf16>, vector<256x128xf32> -> vector<256x128xf32>
    %cst_94 = arith.constant dense<0xFF800000> : vector<128xf32>
    %290 = vector.multi_reduction <maximumf>, %289, %cst_94 [0] : vector<256x128xf32> to vector<128xf32>
    %291 = vector.shape_cast %290 : vector<128xf32> to vector<1x128xf32>
    %292 = vector.broadcast %291 : vector<1x128xf32> to vector<256x128xf32>
    %293 = arith.subf %289, %292 : vector<256x128xf32>
    %294 = math.exp %293 : vector<256x128xf32>
    %cst_95 = arith.constant dense<0.000000e+00> : vector<128xf32>
    %295 = vector.multi_reduction <add>, %294, %cst_95 [0] : vector<256x128xf32> to vector<128xf32>
    %296 = vector.shape_cast %295 : vector<128xf32> to vector<1x128xf32>
    %297 = arith.truncf %294 : vector<256x128xf32> to vector<256x128xbf16>
    %cst_96 = arith.constant dense<0.000000e+00> : vector<4x128xf32>
    %298 = tpu.matmul %264, %297, %cst_96 {dimension_numbers = #tpu.dot_dimension_numbers<[1], [0], [0], [1], [0, 0, 1, 1], [], []>} : vector<4x256xbf16>, vector<256x128xbf16>, vector<4x128xf32> -> vector<4x128xf32>
    %299 = arith.truncf %298 : vector<4x128xf32> to vector<4x128xbf16>
    %cst_97 = arith.constant dense<0.000000e+00> : vector<4x128xf32>
    %300 = tpu.matmul %265, %299, %cst_97 {dimension_numbers = #tpu.dot_dimension_numbers<[1], [0], [0], [1], [0, 0, 1, 1], [], []>} : vector<4x4xbf16>, vector<4x128xbf16>, vector<4x128xf32> -> vector<4x128xf32>
    %301 = tpu.reciprocal %296 : vector<1x128xf32> -> vector<1x128xf32>
    %302 = vector.broadcast %301 : vector<1x128xf32> to vector<4x128xf32>
    %303 = arith.mulf %300, %302 : vector<4x128xf32>
    %304 = vector.broadcast %266 : vector<4x1xf32> to vector<4x128xf32>
    %305 = arith.addf %303, %304 : vector<4x128xf32>
    %c0_98 = arith.constant 0 : index
    %c0_99 = arith.constant 0 : index
    %c128 = arith.constant 128 : index
    %306 = vector.load %arg11[%c0_98, %c0_99, %c128] : memref<1x4x256xf32, #tpu.memory_space<vmem>>, vector<1x4x128xf32>
    %307 = vector.shape_cast %306 : vector<1x4x128xf32> to vector<4x128xf32>
    %308 = vector.shape_cast %305 : vector<4x128xf32> to vector<1x4x128xf32>
    tpu.vector_store %arg11[%c0_98, %c0_99, %c128], %308 {strides = array<i32>} : memref<1x4x256xf32, #tpu.memory_space<vmem>>, vector<1x4x128xf32>,
    return
  }
  func.func @transform_0(%arg0: i32) -> (i32, i32, i32) {
    %c0_i32 = arith.constant 0 : i32
    %c0_i32_0 = arith.constant 0 : i32
    %c0_i32_1 = arith.constant 0 : i32
    return %arg0, %c0_i32, %c0_i32_0 : i32, i32, i32
  }
  func.func @transform_1(%arg0: i32) -> (i32, i32) {
    %c0_i32 = arith.constant 0 : i32
    %c0_i32_0 = arith.constant 0 : i32
    %c0_i32_1 = arith.constant 0 : i32
    return %c0_i32, %c0_i32_0 : i32, i32
  }
  func.func @transform_2(%arg0: i32) -> (i32, i32, i32) {
    %c0_i32 = arith.constant 0 : i32
    %c0_i32_0 = arith.constant 0 : i32
    %c0_i32_1 = arith.constant 0 : i32
    %c0_i32_2 = arith.constant 0 : i32
    return %c0_i32, %c0_i32_0, %c0_i32_1 : i32, i32, i32
  }
  func.func @transform_3(%arg0: i32) -> (i32, i32, i32) {
    %c0_i32 = arith.constant 0 : i32
    %c0_i32_0 = arith.constant 0 : i32
    %c0_i32_1 = arith.constant 0 : i32
    %c0_i32_2 = arith.constant 0 : i32
    return %c0_i32, %c0_i32_0, %c0_i32_1 : i32, i32, i32
  }
  func.func @transform_4(%arg0: i32) -> (i32, i32, i32) {
    %c0_i32 = arith.constant 0 : i32
    %c0_i32_0 = arith.constant 0 : i32
    %c0_i32_1 = arith.constant 0 : i32
    %c0_i32_2 = arith.constant 0 : i32
    return %c0_i32, %c0_i32_0, %c0_i32_1 : i32, i32, i32
  }
  func.func @transform_5(%arg0: i32) -> (i32, i32, i32) {
    %c0_i32 = arith.constant 0 : i32
    %c0_i32_0 = arith.constant 0 : i32
    %c0_i32_1 = arith.constant 0 : i32
    %c0_i32_2 = arith.constant 0 : i32
    return %c0_i32, %c0_i32_0, %c0_i32_1 : i32, i32, i32
  }
  func.func @transform_6(%arg0: i32) -> (i32, i32, i32) {
    %c0_i32 = arith.constant 0 : i32
    %c0_i32_0 = arith.constant 0 : i32
    %c0_i32_1 = arith.constant 0 : i32
    %c0_i32_2 = arith.constant 0 : i32
    return %c0_i32, %c0_i32_0, %c0_i32_1 : i32, i32, i32
  }
  func.func @transform_7(%arg0: i32) -> (i32, i32, i32) {
    %c0_i32 = arith.constant 0 : i32
    %c0_i32_0 = arith.constant 0 : i32
    %c0_i32_1 = arith.constant 0 : i32
    %c0_i32_2 = arith.constant 0 : i32
    return %c0_i32, %c0_i32_0, %c0_i32_1 : i32, i32, i32
  }
  func.func @transform_8(%arg0: i32) -> (i32, i32) {
    %c0_i32 = arith.constant 0 : i32
    %c0_i32_0 = arith.constant 0 : i32
    %c0_i32_1 = arith.constant 0 : i32
    return %c0_i32, %c0_i32_0 : i32, i32
  }
  func.func @transform_9(%arg0: i32) -> (i32, i32) {
    %c0_i32 = arith.constant 0 : i32
    %c0_i32_0 = arith.constant 0 : i32
    %c0_i32_1 = arith.constant 0 : i32
    return %c0_i32, %c0_i32_0 : i32, i32
  }
  func.func @transform_10(%arg0: i32) -> (i32, i32, i32) {
    %c0_i32 = arith.constant 0 : i32
    %c0_i32_0 = arith.constant 0 : i32
    %c0_i32_1 = arith.constant 0 : i32
    return %arg0, %c0_i32, %c0_i32_0 : i32, i32, i32
  }
}

</mosaic_0001>

<llo_original>
// kernel: attention_forward.1
$region0: #{attention_forward.1}
  #allocation0 [shape = 'u32[]', space=smem, size = 0x4, offset = 0x4, fixed_abs, tag = 'smem constant byte address 0x4 - core index']
  #allocation1 [shape = 'u32[144,128]{1,0:T(1,128)}', space=vmem, size = 0x12000, scoped, tag = 'internal scratch']
  %s0 = inlined_call_operand.vmem [shape: f32[2,4,290], index: 0, kind: input, shape index: {}]
  %s1 = inlined_call_operand.vmem [shape: f32[2,256], index: 1, kind: input, shape index: {}]
  %s2 = inlined_call_operand.vmem [shape: f32[3,4,9], index: 2, kind: input, shape index: {}]
  %s3 = inlined_call_operand.vmem [shape: f32[3,4,1], index: 3, kind: input, shape index: {}]
  %s4 = inlined_call_operand.vmem [shape: f32[3,4,1], index: 4, kind: input, shape index: {}]
  %s5 = inlined_call_operand.vmem [shape: f32[3,4,1], index: 5, kind: input, shape index: {}]
  %s6 = inlined_call_operand.vmem [shape: bf16[3,4,4], index: 6, kind: input, shape index: {}]
  %s7 = inlined_call_operand.vmem [shape: f32[3,4,1], index: 7, kind: input, shape index: {}]
  %s8 = inlined_call_operand.vmem [shape: bf16[4,4], index: 8, kind: input, shape index: {}]
  %s9 = inlined_call_operand.vmem [shape: f32[4,1], index: 9, kind: input, shape index: {}]
  %s10 = inlined_call_operand.vmem [shape: f32[2,4,256], index: 10, kind: output, shape index: {}]
  %s11 = sld [smem:[#allocation0]]
  $region73: #{attention_forward.1} parent=0
    _
  %s13 = ssub.s32 1, %s11
  %s14 = scalar_select 0, %s13, %s11
  loop: start=0, step=1, limit=4
  $region2: #{attention_forward.1} parent=0 // loop_pre_header
    _
  $region3: #{attention_forward.1} parent=0 // loop_header
    %s16 = sphi 0, %s20
    %p17 = scmp.ge.s32.totalorder %s16, 4
    %s26 = sphi 0, %s28
    %s29 = sphi 0, %s26
    %s30 = sphi 0, %s29
    %s46 = sphi 0, %s30
    %s50 = sphi 0, %s50
    %s52 = sphi 0, %s50
    %s53 = sphi 0, %s52
    %s67 = sphi 0, %s53
    %s71 = sphi 0, %s71
    %s73 = sphi 0, %s71
    %s74 = sphi 0, %s73
    %s88 = sphi 0, %s74
    %s92 = sphi 0, %s92
    %s94 = sphi 0, %s92
    %s95 = sphi 0, %s94
    %s109 = sphi 0, %s95
    %s113 = sphi 0, %s113
    %s115 = sphi 0, %s113
    %s116 = sphi 0, %s115
    %s130 = sphi 0, %s116
    %s134 = sphi 0, %s134
    %s136 = sphi 0, %s134
    %s137 = sphi 0, %s136
    %s151 = sphi 0, %s137
    %s155 = sphi 0, %s155
    %s157 = sphi 0, %s155
    %s158 = sphi 0, %s157
    %s172 = sphi 0, %s158
    %s176 = sphi 0, %s176
    %s178 = sphi 0, %s176
    %s179 = sphi 0, %s178
    %s193 = sphi 0, %s179
    %s197 = sphi 0, %s197
    %s199 = sphi 0, %s197
    %s200 = sphi 0, %s199
    %s214 = sphi 0, %s200
    %s218 = sphi 0, %s218
    %s220 = sphi 0, %s218
    %s221 = sphi 0, %s220
    %s235 = sphi 0, %s221
    %s241 = sphi 0, %s243
    %s244 = sphi 0, %s241
    %s245 = sphi 0, %s244
    %s261 = sphi 0, %s245
  $region4: #{attention_forward.1} parent=0 // loop_header_branch
    %19 = sbr.rel (%p17) target = $region8
  $region5: #{attention_forward.1} parent=0 // loop_body
    %s21 = ssub.s32 %s16, 1
    %s22 = ssub.s32 %s16, 2
    %s23 = sadd.s32 %s16, 1
    %s24 = ssub.s32 %s16, %s23
    %p25 = scmp.eq.s32.totalorder %s24, 0
    %s27 = sadd.s32 %s26, 1
    %s28 = scalar_select %p25, %s26, %s27
    %p31 = pneg %p25
    %p32 = scmp.eq.s32.totalorder %s16, 1
    %p33 = por %p31, %p32
    %p34 = scmp.ne.s32.totalorder %s26, %s29
    %p35 = scmp.eq.s32.totalorder %s16, 0
    %p36 = por %p34, %p35
    %p37 = scmp.ne.s32.totalorder %s26, %s29
    %p38 = scmp.eq.s32.totalorder %s21, 1
    %p39 = por %p37, %p38
    %p40 = scmp.ne.s32.totalorder %s29, %s30
    %p41 = scmp.eq.s32.totalorder %s21, 0
    %p42 = por %p40, %p41
    %p43 = scmp.ne.s32.totalorder %s29, %s30
    %p44 = scmp.eq.s32.totalorder %s22, 1
    %p45 = por %p43, %p44
    %p47 = scmp.ne.s32.totalorder %s30, %s46
    %p48 = scmp.eq.s32.totalorder %s22, 0
    %p49 = por %p47, %p48
    %s51 = sadd.s32 %s50, 1
    %p54 = scmp.eq.s32.totalorder %s16, 1
    %p55 = scmp.ne.s32.totalorder %s50, %s52
    %p56 = scmp.eq.s32.totalorder %s16, 0
    %p57 = por %p55, %p56
    %p58 = scmp.ne.s32.totalorder %s50, %s52
    %p59 = scmp.eq.s32.totalorder %s21, 1
    %p60 = por %p58, %p59
    %p61 = scmp.ne.s32.totalorder %s52, %s53
    %p62 = scmp.eq.s32.totalorder %s21, 0
    %p63 = por %p61, %p62
    %p64 = scmp.ne.s32.totalorder %s52, %s53
    %p65 = scmp.eq.s32.totalorder %s22, 1
    %p66 = por %p64, %p65
    %p68 = scmp.ne.s32.totalorder %s53, %s67
    %p69 = scmp.eq.s32.totalorder %s22, 0
    %p70 = por %p68, %p69
    %s72 = sadd.s32 %s71, 1
    %p75 = scmp.eq.s32.totalorder %s16, 1
    %p76 = scmp.ne.s32.totalorder %s71, %s73
    %p77 = scmp.eq.s32.totalorder %s16, 0
    %p78 = por %p76, %p77
    %p79 = scmp.ne.s32.totalorder %s71, %s73
    %p80 = scmp.eq.s32.totalorder %s21, 1
    %p81 = por %p79, %p80
    %p82 = scmp.ne.s32.totalorder %s73, %s74
    %p83 = scmp.eq.s32.totalorder %s21, 0
    %p84 = por %p82, %p83
    %p85 = scmp.ne.s32.totalorder %s73, %s74
    %p86 = scmp.eq.s32.totalorder %s22, 1
    %p87 = por %p85, %p86
    %p89 = scmp.ne.s32.totalorder %s74, %s88
    %p90 = scmp.eq.s32.totalorder %s22, 0
    %p91 = por %p89, %p90
    %s93 = sadd.s32 %s92, 1
    %p96 = scmp.eq.s32.totalorder %s16, 1
    %p97 = scmp.ne.s32.totalorder %s92, %s94
    %p98 = scmp.eq.s32.totalorder %s16, 0
    %p99 = por %p97, %p98
    %p100 = scmp.ne.s32.totalorder %s92, %s94
    %p101 = scmp.eq.s32.totalorder %s21, 1
    %p102 = por %p100, %p101
    %p103 = scmp.ne.s32.totalorder %s94, %s95
    %p104 = scmp.eq.s32.totalorder %s21, 0
    %p105 = por %p103, %p104
    %p106 = scmp.ne.s32.totalorder %s94, %s95
    %p107 = scmp.eq.s32.totalorder %s22, 1
    %p108 = por %p106, %p107
    %p110 = scmp.ne.s32.totalorder %s95, %s109
    %p111 = scmp.eq.s32.totalorder %s22, 0
    %p112 = por %p110, %p111
    %s114 = sadd.s32 %s113, 1
    %p117 = scmp.eq.s32.totalorder %s16, 1
    %p118 = scmp.ne.s32.totalorder %s113, %s115
    %p119 = scmp.eq.s32.totalorder %s16, 0
    %p120 = por %p118, %p119
    %p121 = scmp.ne.s32.totalorder %s113, %s115
    %p122 = scmp.eq.s32.totalorder %s21, 1
    %p123 = por %p121, %p122
    %p124 = scmp.ne.s32.totalorder %s115, %s116
    %p125 = scmp.eq.s32.totalorder %s21, 0
    %p126 = por %p124, %p125
    %p127 = scmp.ne.s32.totalorder %s115, %s116
    %p128 = scmp.eq.s32.totalorder %s22, 1
    %p129 = por %p127, %p128
    %p131 = scmp.ne.s32.totalorder %s116, %s130
    %p132 = scmp.eq.s32.totalorder %s22, 0
    %p133 = por %p131, %p132
    %s135 = sadd.s32 %s134, 1
    %p138 = scmp.eq.s32.totalorder %s16, 1
    %p139 = scmp.ne.s32.totalorder %s134, %s136
    %p140 = scmp.eq.s32.totalorder %s16, 0
    %p141 = por %p139, %p140
    %p142 = scmp.ne.s32.totalorder %s134, %s136
    %p143 = scmp.eq.s32.totalorder %s21, 1
    %p144 = por %p142, %p143
    %p145 = scmp.ne.s32.totalorder %s136, %s137
    %p146 = scmp.eq.s32.totalorder %s21, 0
    %p147 = por %p145, %p146
    %p148 = scmp.ne.s32.totalorder %s136, %s137
    %p149 = scmp.eq.s32.totalorder %s22, 1
    %p150 = por %p148, %p149
    %p152 = scmp.ne.s32.totalorder %s137, %s151
    %p153 = scmp.eq.s32.totalorder %s22, 0
    %p154 = por %p152, %p153
    %s156 = sadd.s32 %s155, 1
    %p159 = scmp.eq.s32.totalorder %s16, 1
    %p160 = scmp.ne.s32.totalorder %s155, %s157
    %p161 = scmp.eq.s32.totalorder %s16, 0
    %p162 = por %p160, %p161
    %p163 = scmp.ne.s32.totalorder %s155, %s157
    %p164 = scmp.eq.s32.totalorder %s21, 1
    %p165 = por %p163, %p164
    %p166 = scmp.ne.s32.totalorder %s157, %s158
    %p167 = scmp.eq.s32.totalorder %s21, 0
    %p168 = por %p166, %p167
    %p169 = scmp.ne.s32.totalorder %s157, %s158
    %p170 = scmp.eq.s32.totalorder %s22, 1
    %p171 = por %p169, %p170
    %p173 = scmp.ne.s32.totalorder %s158, %s172
    %p174 = scmp.eq.s32.totalorder %s22, 0
    %p175 = por %p173, %p174
    %s177 = sadd.s32 %s176, 1
    %p180 = scmp.eq.s32.totalorder %s16, 1
    %p181 = scmp.ne.s32.totalorder %s176, %s178
    %p182 = scmp.eq.s32.totalorder %s16, 0
    %p183 = por %p181, %p182
    %p184 = scmp.ne.s32.totalorder %s176, %s178
    %p185 = scmp.eq.s32.totalorder %s21, 1
    %p186 = por %p184, %p185
    %p187 = scmp.ne.s32.totalorder %s178, %s179
    %p188 = scmp.eq.s32.totalorder %s21, 0
    %p189 = por %p187, %p188
    %p190 = scmp.ne.s32.totalorder %s178, %s179
    %p191 = scmp.eq.s32.totalorder %s22, 1
    %p192 = por %p190, %p191
    %p194 = scmp.ne.s32.totalorder %s179, %s193
    %p195 = scmp.eq.s32.totalorder %s22, 0
    %p196 = por %p194, %p195
    %s198 = sadd.s32 %s197, 1
    %p201 = scmp.eq.s32.totalorder %s16, 1
    %p202 = scmp.ne.s32.totalorder %s197, %s199
    %p203 = scmp.eq.s32.totalorder %s16, 0
    %p204 = por %p202, %p203
    %p205 = scmp.ne.s32.totalorder %s197, %s199
    %p206 = scmp.eq.s32.totalorder %s21, 1
    %p207 = por %p205, %p206
    %p208 = scmp.ne.s32.totalorder %s199, %s200
    %p209 = scmp.eq.s32.totalorder %s21, 0
    %p210 = por %p208, %p209
    %p211 = scmp.ne.s32.totalorder %s199, %s200
    %p212 = scmp.eq.s32.totalorder %s22, 1
    %p213 = por %p211, %p212
    %p215 = scmp.ne.s32.totalorder %s200, %s214
    %p216 = scmp.eq.s32.totalorder %s22, 0
    %p217 = por %p215, %p216
    %s219 = sadd.s32 %s218, 1
    %p222 = scmp.eq.s32.totalorder %s16, 1
    %p223 = scmp.ne.s32.totalorder %s218, %s220
    %p224 = scmp.eq.s32.totalorder %s16, 0
    %p225 = por %p223, %p224
    %p226 = scmp.ne.s32.totalorder %s218, %s220
    %p227 = scmp.eq.s32.totalorder %s21, 1
    %p228 = por %p226, %p227
    %p229 = scmp.ne.s32.totalorder %s220, %s221
    %p230 = scmp.eq.s32.totalorder %s21, 0
    %p231 = por %p229, %p230
    %p232 = scmp.ne.s32.totalorder %s220, %s221
    %p233 = scmp.eq.s32.totalorder %s22, 1
    %p234 = por %p232, %p233
    %p236 = scmp.ne.s32.totalorder %s221, %s235
    %p237 = scmp.eq.s32.totalorder %s22, 0
    %p238 = por %p236, %p237
    %s239 = ssub.s32 %s16, %s23
    %p240 = scmp.eq.s32.totalorder %s239, 0
    %s242 = sadd.s32 %s241, 1
    %s243 = scalar_select %p240, %s241, %s242
    %p246 = pneg %p240
    %p247 = scmp.eq.s32.totalorder %s16, 1
    %p248 = por %p246, %p247
    %p249 = scmp.ne.s32.totalorder %s241, %s244
    %p250 = scmp.eq.s32.totalorder %s16, 0
    %p251 = por %p249, %p250
    %p252 = scmp.ne.s32.totalorder %s241, %s244
    %p253 = scmp.eq.s32.totalorder %s21, 1
    %p254 = por %p252, %p253
    %p255 = scmp.ne.s32.totalorder %s244, %s245
    %p256 = scmp.eq.s32.totalorder %s21, 0
    %p257 = por %p255, %p256
    %p258 = scmp.ne.s32.totalorder %s244, %s245
    %p259 = scmp.eq.s32.totalorder %s22, 1
    %p260 = por %p258, %p259
    %p262 = scmp.ne.s32.totalorder %s245, %s261
    %p263 = scmp.eq.s32.totalorder %s22, 0
    %p264 = por %p262, %p263
    %p265 = scmp.le.s32.totalorder 1, %s16
    %p266 = scmp.lt.s32.totalorder %s16, 3
    %p267 = pnand %p265, %p266
    %p268 = pneg %p267
    // Predicated region
    $region9: #{attention_forward.1} parent=5 // pred_check
      _
    $region10: #{attention_forward.1} parent=5 // pred_check_branch
      %270 = sbr.rel (%p267) target = $region12
    $region11: #{attention_forward.1} parent=5 // pred_region
      %s271 = ssub.s32 %s16, 1
      // Predicated region
      $region13: #{attention_forward.1} parent=11 // pred_check
        %p272 = pneg %p63
      $region14: #{attention_forward.1} parent=11 // pred_check_branch
        %274 = sbr.rel (%p272) target = $region16
      $region15: #{attention_forward.1} parent=11 // pred_region
        _
      $region16: #{attention_forward.1} parent=11 // pred_fallthru
        _
      // Predicated region
      $region17: #{attention_forward.1} parent=11 // pred_check
        %p275 = pneg %p84
      $region18: #{attention_forward.1} parent=11 // pred_check_branch
        %277 = sbr.rel (%p275) target = $region20
      $region19: #{attention_forward.1} parent=11 // pred_region
        _
      $region20: #{attention_forward.1} parent=11 // pred_fallthru
        _
      // Predicated region
      $region21: #{attention_forward.1} parent=11 // pred_check
        %p278 = pneg %p105
      $region22: #{attention_forward.1} parent=11 // pred_check_branch
        %280 = sbr.rel (%p278) target = $region24
      $region23: #{attention_forward.1} parent=11 // pred_region
        _
      $region24: #{attention_forward.1} parent=11 // pred_fallthru
        _
      // Predicated region
      $region25: #{attention_forward.1} parent=11 // pred_check
        %p281 = pneg %p126
      $region26: #{attention_forward.1} parent=11 // pred_check_branch
        %283 = sbr.rel (%p281) target = $region28
      $region27: #{attention_forward.1} parent=11 // pred_region
        _
      $region28: #{attention_forward.1} parent=11 // pred_fallthru
        _
      // Predicated region
      $region29: #{attention_forward.1} parent=11 // pred_check
        %p284 = pneg %p147
      $region30: #{attention_forward.1} parent=11 // pred_check_branch
        %286 = sbr.rel (%p284) target = $region32
      $region31: #{attention_forward.1} parent=11 // pred_region
        _
      $region32: #{attention_forward.1} parent=11 // pred_fallthru
        _
      // Predicated region
      $region33: #{attention_forward.1} parent=11 // pred_check
        %p287 = pneg %p168
      $region34: #{attention_forward.1} parent=11 // pred_check_branch
        %289 = sbr.rel (%p287) target = $region36
      $region35: #{attention_forward.1} parent=11 // pred_region
        _
      $region36: #{attention_forward.1} parent=11 // pred_fallthru
        _
      // Predicated region
      $region37: #{attention_forward.1} parent=11 // pred_check
        %p290 = pneg %p189
      $region38: #{attention_forward.1} parent=11 // pred_check_branch
        %292 = sbr.rel (%p290) target = $region40
      $region39: #{attention_forward.1} parent=11 // pred_region
        _
      $region40: #{attention_forward.1} parent=11 // pred_fallthru
        _
      // Predicated region
      $region41: #{attention_forward.1} parent=11 // pred_check
        %p293 = pneg %p210
      $region42: #{attention_forward.1} parent=11 // pred_check_branch
        %295 = sbr.rel (%p293) target = $region44
      $region43: #{attention_forward.1} parent=11 // pred_region
        _
      $region44: #{attention_forward.1} parent=11 // pred_fallthru
        _
      // Predicated region
      $region45: #{attention_forward.1} parent=11 // pred_check
        %p296 = pneg %p231
      $region46: #{attention_forward.1} parent=11 // pred_check_branch
        %298 = sbr.rel (%p296) target = $region48
      $region47: #{attention_forward.1} parent=11 // pred_region
        _
      $region48: #{attention_forward.1} parent=11 // pred_fallthru
        _
    $region12: #{attention_forward.1} parent=5 // pred_fallthru
      _
    %p299 = scmp.lt.s32.totalorder %s16, 2
    // Predicated region
    $region49: #{attention_forward.1} parent=5 // pred_check
      %p300 = pneg %p299
    $region50: #{attention_forward.1} parent=5 // pred_check_branch
      %302 = sbr.rel (%p300) target = $region52
    $region51: #{attention_forward.1} parent=5 // pred_region
      // Predicated region
      $region53: #{attention_forward.1} parent=51 // pred_check
        %p303 = pneg %p36
      $region54: #{attention_forward.1} parent=51 // pred_check_branch
        %305 = sbr.rel (%p303) target = $region56
      $region55: #{attention_forward.1} parent=51 // pred_region
        %p306 = scmp.lt.s32.totalorder %s16, 1
        %s307 = scalar_select %p306, %s16, 1
        %s308 = smul.addr %s307, 3
        %s309 = smul.addr %s308, 4
        %s310 = scalar_lea.vmem %s0, %s309
      $region56: #{attention_forward.1} parent=51 // pred_fallthru
        _
    $region52: #{attention_forward.1} parent=5 // pred_fallthru
      _
    %p311 = scmp.le.s32.totalorder 1, %s16
    %p312 = scmp.lt.s32.totalorder %s16, 3
    %p313 = pnand %p311, %p312
    %p314 = pneg %p313
    // Predicated region
    $region57: #{attention_forward.1} parent=5 // pred_check
      _
    $region58: #{attention_forward.1} parent=5 // pred_check_branch
      %316 = sbr.rel (%p313) target = $region60
    $region59: #{attention_forward.1} parent=5 // pred_region
      %s317 = ssub.s32 %s16, 1
      %p318 = scmp.lt.s32.totalorder %s21, 1
      %s319 = scalar_select %p318, %s21, 1
      %s320 = smul.addr %s319, 3
      %s321 = smul.addr %s320, 4
      %s322 = scalar_lea.vmem %s0, %s321
      %p323 = pneg %p42
      %p324 = pneg %p39
      %p325 = pneg %p63
      %p326 = pneg %p60
      %p327 = pneg %p84
      %p328 = pneg %p81
      %p329 = pneg %p105
      %p330 = pneg %p102
      %p331 = pneg %p126
      %p332 = pneg %p123
      %p333 = pneg %p147
      %p334 = pneg %p144
      %p335 = pneg %p168
      %p336 = pneg %p165
      %p337 = pneg %p189
      %p338 = pneg %p186
      %p339 = pneg %p210
      %p340 = pneg %p207
      %p341 = pneg %p231
      %p342 = pneg %p228
      %p343 = pneg %p257
      %p344 = pneg %p254
      %p345 = scmp.lt.s32.totalorder %s21, 1
      %s346 = scalar_select %p345, %s21, 1
      %s347 = smul.addr %s346, 2
      %s348 = smul.addr %s347, 4
      %s349 = scalar_lea.vmem %s10, %s348
      %p350 = scmp.lt.s32.totalorder %s21, 1
      %s351 = scalar_select %p350, %s21, 1
      %s352 = smul.addr %s351, 3
      %s353 = smul.addr %s352, 4
      %s354 = scalar_lea.vmem %s0, %s353
      %p355 = scmp.lt.s32.totalorder %s21, 1
      %s356 = scalar_select %p355, %s21, 1
      %s357 = smul.addr %s356, 2
      %s358 = smul.addr %s357, 4
      %s359 = scalar_lea.vmem %s10, %s358
      %v361 = vld [vmem:[%s354] sm:$0xff]
      %v362 = vld [vmem:[%s354 + $0x8] sm:$0xf]
      %v363 = vld [vmem:[%s1] ss:$2 sm:$0x3]
      %s364 = scalar_lea.vmem %s1, 1
      %v365 = vld [vmem:[%s364] ss:$2 sm:$0x3]
      %v366 = vld [vmem:[%s2] sm:$0xf]
      %s367 = scalar_lea.vmem %s2, 4
      %v368 = vld [vmem:[%s367] sm:$0xf]
      %s369 = scalar_lea.vmem %s2, 8
      %v370 = vld [vmem:[%s369] sm:$0xf]
      %v372 = vlaneseq
      %v373 = vshrl.u32 %v372, 7
      %v374 = vsub.s32 0, %v373
      %v375 = vrot.slane %v363, %v374
      %v376 = vlaneseq
      %v377 = vshrl.u32 %v376, 7
      %v378 = vsub.s32 1, %v377
      %v379 = vrot.slane %v363, %v378
      %v380 = vcombine.low %v375, %v379
      %v382 = vmul.f32 %v361, %v380
      %384 = vset.pattern.permute.xlu0 0
      %385 = vperm.xlu0 %384, %v366
      %v386 = vpop.permute.xlu0 %385
      %v388 = vunpack.c.l.s4 839922192
      %v389 = vunpack.c.0.s8 %v388
      %v390 = vlaneseq
      %v391 = vshrl.u32 %v390, 7
      %v392 = vsub.s32 %v389, %v391
      %v393 = vrot.slane %v386, %v392
      %v395 = vmul.f32 %v382, %v393
      %v396 = vadd.f32 %v395, 0.0
      %398 = vset.pattern.permute.xlu0 0
      %399 = vperm.xlu0 %398, %v368
      %v400 = vpop.permute.xlu0 %399
      %v402 = vunpack.c.l.s4 839922192
      %v403 = vunpack.c.0.s8 %v402
      %v404 = vlaneseq
      %v405 = vshrl.u32 %v404, 7
      %v406 = vsub.s32 %v403, %v405
      %v407 = vrot.slane %v400, %v406
      %v409 = vmul.f32 %v382, %v407
      %v410 = vadd.f32 %v409, 0.0
      %412 = vset.pattern.permute.xlu0 0
      %413 = vperm.xlu0 %412, %v370
      %v414 = vpop.permute.xlu0 %413
      %v416 = vunpack.c.l.s4 839922192
      %v417 = vunpack.c.0.s8 %v416
      %v418 = vlaneseq
      %v419 = vshrl.u32 %v418, 7
      %v420 = vsub.s32 %v417, %v419
      %v421 = vrot.slane %v414, %v420
      %v423 = vmul.f32 %v382, %v421
      %v424 = vadd.f32 %v423, 0.0
      %425 = vset.pattern.permute.xlu0 1
      %426 = vperm.xlu0 %425, %v366
      %v427 = vpop.permute.xlu0 %426
      %v429 = vunpack.c.l.s4 839922192
      %v430 = vunpack.c.0.s8 %v429
      %v431 = vlaneseq
      %v432 = vshrl.u32 %v431, 7
      %v433 = vsub.s32 %v430, %v432
      %v434 = vrot.slane %v427, %v433
      %v436 = vmul.f32 %v361, %v434
      %v437 = vmul.f32 %v362, %v434
      %440 = vrot.lane.b32.xlu0 %v436, 127
      %v441 = vpop.permute.xlu0 %440
      %442 = vrot.lane.b32.xlu0 %v437, 127
      %v443 = vpop.permute.xlu0 %442
      %v444 = vrot.slane %v441, 4
      %v445 = vrot.slane %v443, 4
      %vm446 = vcmask 1043456
      %v447 = vsel %vm446, %v444, %v445
      %vm448 = vcmask 1039360
      %v449 = vsel %vm448, %v441, %v447
      %v451 = vadd.f32 %v396, %v449
      %452 = vset.pattern.permute.xlu0 1
      %453 = vperm.xlu0 %452, %v368
      %v454 = vpop.permute.xlu0 %453
      %v456 = vunpack.c.l.s4 839922192
      %v457 = vunpack.c.0.s8 %v456
      %v458 = vlaneseq
      %v459 = vshrl.u32 %v458, 7
      %v460 = vsub.s32 %v457, %v459
      %v461 = vrot.slane %v454, %v460
      %v463 = vmul.f32 %v361, %v461
      %v464 = vmul.f32 %v362, %v461
      %467 = vrot.lane.b32.xlu0 %v463, 127
      %v468 = vpop.permute.xlu0 %467
      %469 = vrot.lane.b32.xlu0 %v464, 127
      %v470 = vpop.permute.xlu0 %469
      %v471 = vrot.slane %v468, 4
      %v472 = vrot.slane %v470, 4
      %v473 = vsel %vm446, %v471, %v472
      %v474 = vsel %vm448, %v468, %v473
      %v476 = vadd.f32 %v410, %v474
      %477 = vset.pattern.permute.xlu0 1
      %478 = vperm.xlu0 %477, %v370
      %v479 = vpop.permute.xlu0 %478
      %v481 = vunpack.c.l.s4 839922192
      %v482 = vunpack.c.0.s8 %v481
      %v483 = vlaneseq
      %v484 = vshrl.u32 %v483, 7
      %v485 = vsub.s32 %v482, %v484
      %v486 = vrot.slane %v479, %v485
      %v488 = vmul.f32 %v361, %v486
      %v489 = vmul.f32 %v362, %v486
      %492 = vrot.lane.b32.xlu0 %v488, 127
      %v493 = vpop.permute.xlu0 %492
      %494 = vrot.lane.b32.xlu0 %v489, 127
      %v495 = vpop.permute.xlu0 %494
      %v496 = vrot.slane %v493, 4
      %v497 = vrot.slane %v495, 4
      %v498 = vsel %vm446, %v496, %v497
      %v499 = vsel %vm448, %v493, %v498
      %v501 = vadd.f32 %v424, %v499
      %v503 = vlaneseq
      %v504 = vshrl.u32 %v503, 7
      %v505 = vsub.s32 0, %v504
      %v506 = vrot.slane %v365, %v505
      %v507 = vlaneseq
      %v508 = vshrl.u32 %v507, 7
      %v509 = vsub.s32 1, %v508
      %v510 = vrot.slane %v365, %v509
      %v511 = vcombine.low %v506, %v510
      %512 = vrot.lane.b32.xlu0 %v511, 2
      %v513 = vpop.permute.xlu0 %512
      %v514 = vrot.slane %v513, 4
      %vm515 = vcmask 15360
      %v516 = vsel %vm515, %v514, %v513
      %v519 = vmul.f32 %v361, %v516
      %v520 = vmul.f32 %v362, %v514
      %521 = vset.pattern.permute.xlu0 2
      %522 = vperm.xlu0 %521, %v366
      %v523 = vpop.permute.xlu0 %522
      %v525 = vunpack.c.l.s4 839922192
      %v526 = vunpack.c.0.s8 %v525
      %v527 = vlaneseq
      %v528 = vshrl.u32 %v527, 7
      %v529 = vsub.s32 %v526, %v528
      %v530 = vrot.slane %v523, %v529
      %v532 = vmul.f32 %v519, %v530
      %v533 = vmul.f32 %v520, %v530
      %536 = vrot.lane.b32.xlu0 %v532, 126
      %v537 = vpop.permute.xlu0 %536
      %538 = vrot.lane.b32.xlu0 %v533, 126
      %v539 = vpop.permute.xlu0 %538
      %v540 = vrot.slane %v537, 4
      %v541 = vrot.slane %v539, 4
      %v542 = vsel %vm446, %v540, %v541
      %vm543 = vcmask 1031168
      %v544 = vsel %vm543, %v537, %v542
      %v546 = vadd.f32 %v451, %v544
      %547 = vset.pattern.permute.xlu0 2
      %548 = vperm.xlu0 %547, %v368
      %v549 = vpop.permute.xlu0 %548
      %v551 = vunpack.c.l.s4 839922192
      %v552 = vunpack.c.0.s8 %v551
      %v553 = vlaneseq
      %v554 = vshrl.u32 %v553, 7
      %v555 = vsub.s32 %v552, %v554
      %v556 = vrot.slane %v549, %v555
      %v558 = vmul.f32 %v519, %v556
      %v559 = vmul.f32 %v520, %v556
      %562 = vrot.lane.b32.xlu0 %v558, 126
      %v563 = vpop.permute.xlu0 %562
      %564 = vrot.lane.b32.xlu0 %v559, 126
      %v565 = vpop.permute.xlu0 %564
      %v566 = vrot.slane %v563, 4
      %v567 = vrot.slane %v565, 4
      %v568 = vsel %vm446, %v566, %v567
      %v569 = vsel %vm543, %v563, %v568
      %v571 = vadd.f32 %v476, %v569
      %572 = vset.pattern.permute.xlu0 2
      %573 = vperm.xlu0 %572, %v370
      %v574 = vpop.permute.xlu0 %573
      %v576 = vunpack.c.l.s4 839922192
      %v577 = vunpack.c.0.s8 %v576
      %v578 = vlaneseq
      %v579 = vshrl.u32 %v578, 7
      %v580 = vsub.s32 %v577, %v579
      %v581 = vrot.slane %v574, %v580
      %v583 = vmul.f32 %v519, %v581
      %v584 = vmul.f32 %v520, %v581
      %587 = vrot.lane.b32.xlu0 %v583, 126
      %v588 = vpop.permute.xlu0 %587
      %589 = vrot.lane.b32.xlu0 %v584, 126
      %v590 = vpop.permute.xlu0 %589
      %v591 = vrot.slane %v588, 4
      %v592 = vrot.slane %v590, 4
      %v593 = vsel %vm446, %v591, %v592
      %v594 = vsel %vm543, %v588, %v593
      %v596 = vadd.f32 %v501, %v594
      %597 = vrot.lane.b32.xlu0 %v380, 16
      %v598 = vpop.permute.xlu0 %597
      %v599 = vrot.slane %v598, 4
      %vm600 = vcmask 130048
      %v601 = vsel %vm600, %v599, %v598
      %v604 = vmul.f32 %v361, %v601
      %v605 = vmul.f32 %v362, %v599
      %606 = vset.pattern.permute.xlu0 3
      %607 = vperm.xlu0 %606, %v366
      %v608 = vpop.permute.xlu0 %607
      %v610 = vunpack.c.l.s4 839922192
      %v611 = vunpack.c.0.s8 %v610
      %v612 = vlaneseq
      %v613 = vshrl.u32 %v612, 7
      %v614 = vsub.s32 %v611, %v613
      %v615 = vrot.slane %v608, %v614
      %v617 = vmul.f32 %v604, %v615
      %v618 = vmul.f32 %v605, %v615
      %621 = vrot.lane.b32.xlu0 %v617, 112
      %v622 = vpop.permute.xlu0 %621
      %623 = vrot.lane.b32.xlu0 %v618, 112
      %v624 = vpop.permute.xlu0 %623
      %v625 = vrot.slane %v622, 4
      %v626 = vrot.slane %v624, 4
      %v627 = vsel %vm446, %v625, %v626
      %vm628 = vcmask 916480
      %v629 = vsel %vm628, %v622, %v627
      %v631 = vadd.f32 %v546, %v629
      %632 = vset.pattern.permute.xlu0 3
      %633 = vperm.xlu0 %632, %v368
      %v634 = vpop.permute.xlu0 %633
      %v636 = vunpack.c.l.s4 839922192
      %v637 = vunpack.c.0.s8 %v636
      %v638 = vlaneseq
      %v639 = vshrl.u32 %v638, 7
      %v640 = vsub.s32 %v637, %v639
      %v641 = vrot.slane %v634, %v640
      %v643 = vmul.f32 %v604, %v641
      %v644 = vmul.f32 %v605, %v641
      %647 = vrot.lane.b32.xlu0 %v643, 112
      %v648 = vpop.permute.xlu0 %647
      %649 = vrot.lane.b32.xlu0 %v644, 112
      %v650 = vpop.permute.xlu0 %649
      %v651 = vrot.slane %v648, 4
      %v652 = vrot.slane %v650, 4
      %v653 = vsel %vm446, %v651, %v652
      %v654 = vsel %vm628, %v648, %v653
      %v656 = vadd.f32 %v571, %v654
      %657 = vset.pattern.permute.xlu0 3
      %658 = vperm.xlu0 %657, %v370
      %v659 = vpop.permute.xlu0 %658
      %v661 = vunpack.c.l.s4 839922192
      %v662 = vunpack.c.0.s8 %v661
      %v663 = vlaneseq
      %v664 = vshrl.u32 %v663, 7
      %v665 = vsub.s32 %v662, %v664
      %v666 = vrot.slane %v659, %v665
      %v668 = vmul.f32 %v604, %v666
      %v669 = vmul.f32 %v605, %v666
      %672 = vrot.lane.b32.xlu0 %v668, 112
      %v673 = vpop.permute.xlu0 %672
      %674 = vrot.lane.b32.xlu0 %v669, 112
      %v675 = vpop.permute.xlu0 %674
      %v676 = vrot.slane %v673, 4
      %v677 = vrot.slane %v675, 4
      %v678 = vsel %vm446, %v676, %v677
      %v679 = vsel %vm628, %v673, %v678
      %v681 = vadd.f32 %v596, %v679
      %682 = vset.pattern.permute.xlu0 4
      %683 = vperm.xlu0 %682, %v366
      %v684 = vpop.permute.xlu0 %683
      %v686 = vunpack.c.l.s4 839922192
      %v687 = vunpack.c.0.s8 %v686
      %v688 = vlaneseq
      %v689 = vshrl.u32 %v688, 7
      %v690 = vsub.s32 %v687, %v689
      %v691 = vrot.slane %v684, %v690
      %v693 = vmul.f32 %v361, %v691
      %v694 = vmul.f32 %v362, %v691
      %697 = vrot.lane.b32.xlu0 %v693, 111
      %v698 = vpop.permute.xlu0 %697
      %699 = vrot.lane.b32.xlu0 %v694, 111
      %v700 = vpop.permute.xlu0 %699
      %v701 = vrot.slane %v698, 4
      %v702 = vrot.slane %v700, 4
      %v703 = vsel %vm446, %v701, %v702
      %vm704 = vcmask 908288
      %v705 = vsel %vm704, %v698, %v703
      %v707 = vadd.f32 %v631, %v705
      %708 = vset.pattern.permute.xlu0 4
      %709 = vperm.xlu0 %708, %v368
      %v710 = vpop.permute.xlu0 %709
      %v712 = vunpack.c.l.s4 839922192
      %v713 = vunpack.c.0.s8 %v712
      %v714 = vlaneseq
      %v715 = vshrl.u32 %v714, 7
      %v716 = vsub.s32 %v713, %v715
      %v717 = vrot.slane %v710, %v716
      %v719 = vmul.f32 %v361, %v717
      %v720 = vmul.f32 %v362, %v717
      %723 = vrot.lane.b32.xlu0 %v719, 111
      %v724 = vpop.permute.xlu0 %723
      %725 = vrot.lane.b32.xlu0 %v720, 111
      %v726 = vpop.permute.xlu0 %725
      %v727 = vrot.slane %v724, 4
      %v728 = vrot.slane %v726, 4
      %v729 = vsel %vm446, %v727, %v728
      %v730 = vsel %vm704, %v724, %v729
      %v732 = vadd.f32 %v656, %v730
      %733 = vset.pattern.permute.xlu0 4
      %734 = vperm.xlu0 %733, %v370
      %v735 = vpop.permute.xlu0 %734
      %v737 = vunpack.c.l.s4 839922192
      %v738 = vunpack.c.0.s8 %v737
      %v739 = vlaneseq
      %v740 = vshrl.u32 %v739, 7
      %v741 = vsub.s32 %v738, %v740
      %v742 = vrot.slane %v735, %v741
      %v744 = vmul.f32 %v361, %v742
      %v745 = vmul.f32 %v362, %v742
      %748 = vrot.lane.b32.xlu0 %v744, 111
      %v749 = vpop.permute.xlu0 %748
      %750 = vrot.lane.b32.xlu0 %v745, 111
      %v751 = vpop.permute.xlu0 %750
      %v752 = vrot.slane %v749, 4
      %v753 = vrot.slane %v751, 4
      %v754 = vsel %vm446, %v752, %v753
      %v755 = vsel %vm704, %v749, %v754
      %v757 = vadd.f32 %v681, %v755
      %758 = vrot.lane.b32.xlu0 %v511, 18
      %v759 = vpop.permute.xlu0 %758
      %v760 = vrot.slane %v759, 4
      %vm761 = vcmask 146432
      %v762 = vsel %vm761, %v760, %v759
      %v765 = vmul.f32 %v361, %v762
      %v766 = vmul.f32 %v362, %v760
      %767 = vset.pattern.permute.xlu0 5
      %768 = vperm.xlu0 %767, %v366
      %v769 = vpop.permute.xlu0 %768
      %v771 = vunpack.c.l.s4 839922192
      %v772 = vunpack.c.0.s8 %v771
      %v773 = vlaneseq
      %v774 = vshrl.u32 %v773, 7
      %v775 = vsub.s32 %v772, %v774
      %v776 = vrot.slane %v769, %v775
      %v778 = vmul.f32 %v765, %v776
      %v779 = vmul.f32 %v766, %v776
      %782 = vrot.lane.b32.xlu0 %v778, 110
      %v783 = vpop.permute.xlu0 %782
      %784 = vrot.lane.b32.xlu0 %v779, 110
      %v785 = vpop.permute.xlu0 %784
      %v786 = vrot.slane %v783, 4
      %v787 = vrot.slane %v785, 4
      %v788 = vsel %vm446, %v786, %v787
      %vm789 = vcmask 900096
      %v790 = vsel %vm789, %v783, %v788
      %v792 = vadd.f32 %v707, %v790
      %793 = vset.pattern.permute.xlu0 5
      %794 = vperm.xlu0 %793, %v368
      %v795 = vpop.permute.xlu0 %794
      %v797 = vunpack.c.l.s4 839922192
      %v798 = vunpack.c.0.s8 %v797
      %v799 = vlaneseq
      %v800 = vshrl.u32 %v799, 7
      %v801 = vsub.s32 %v798, %v800
      %v802 = vrot.slane %v795, %v801
      %v804 = vmul.f32 %v765, %v802
      %v805 = vmul.f32 %v766, %v802
      %808 = vrot.lane.b32.xlu0 %v804, 110
      %v809 = vpop.permute.xlu0 %808
      %810 = vrot.lane.b32.xlu0 %v805, 110
      %v811 = vpop.permute.xlu0 %810
      %v812 = vrot.slane %v809, 4
      %v813 = vrot.slane %v811, 4
      %v814 = vsel %vm446, %v812, %v813
      %v815 = vsel %vm789, %v809, %v814
      %v817 = vadd.f32 %v732, %v815
      %818 = vset.pattern.permute.xlu0 5
      %819 = vperm.xlu0 %818, %v370
      %v820 = vpop.permute.xlu0 %819
      %v822 = vunpack.c.l.s4 839922192
      %v823 = vunpack.c.0.s8 %v822
      %v824 = vlaneseq
      %v825 = vshrl.u32 %v824, 7
      %v826 = vsub.s32 %v823, %v825
      %v827 = vrot.slane %v820, %v826
      %v829 = vmul.f32 %v765, %v827
      %v830 = vmul.f32 %v766, %v827
      %833 = vrot.lane.b32.xlu0 %v829, 110
      %v834 = vpop.permute.xlu0 %833
      %835 = vrot.lane.b32.xlu0 %v830, 110
      %v836 = vpop.permute.xlu0 %835
      %v837 = vrot.slane %v834, 4
      %v838 = vrot.slane %v836, 4
      %v839 = vsel %vm446, %v837, %v838
      %v840 = vsel %vm789, %v834, %v839
      %v842 = vadd.f32 %v757, %v840
      %843 = vrot.lane.b32.xlu0 %v380, 32
      %v844 = vpop.permute.xlu0 %843
      %v845 = vrot.slane %v844, 4
      %vm846 = vcmask 261120
      %v847 = vsel %vm846, %v845, %v844
      %v850 = vmul.f32 %v361, %v847
      %v851 = vmul.f32 %v362, %v845
      %852 = vset.pattern.permute.xlu0 6
      %853 = vperm.xlu0 %852, %v366
      %v854 = vpop.permute.xlu0 %853
      %v856 = vunpack.c.l.s4 839922192
      %v857 = vunpack.c.0.s8 %v856
      %v858 = vlaneseq
      %v859 = vshrl.u32 %v858, 7
      %v860 = vsub.s32 %v857, %v859
      %v861 = vrot.slane %v854, %v860
      %v863 = vmul.f32 %v850, %v861
      %v864 = vmul.f32 %v851, %v861
      %867 = vrot.lane.b32.xlu0 %v863, 96
      %v868 = vpop.permute.xlu0 %867
      %869 = vrot.lane.b32.xlu0 %v864, 96
      %v870 = vpop.permute.xlu0 %869
      %v871 = vrot.slane %v868, 4
      %v872 = vrot.slane %v870, 4
      %v873 = vsel %vm446, %v871, %v872
      %vm874 = vcmask 785408
      %v875 = vsel %vm874, %v868, %v873
      %v877 = vadd.f32 %v792, %v875
      %878 = vset.pattern.permute.xlu0 6
      %879 = vperm.xlu0 %878, %v368
      %v880 = vpop.permute.xlu0 %879
      %v882 = vunpack.c.l.s4 839922192
      %v883 = vunpack.c.0.s8 %v882
      %v884 = vlaneseq
      %v885 = vshrl.u32 %v884, 7
      %v886 = vsub.s32 %v883, %v885
      %v887 = vrot.slane %v880, %v886
      %v889 = vmul.f32 %v850, %v887
      %v890 = vmul.f32 %v851, %v887
      %893 = vrot.lane.b32.xlu0 %v889, 96
      %v894 = vpop.permute.xlu0 %893
      %895 = vrot.lane.b32.xlu0 %v890, 96
      %v896 = vpop.permute.xlu0 %895
      %v897 = vrot.slane %v894, 4
      %v898 = vrot.slane %v896, 4
      %v899 = vsel %vm446, %v897, %v898
      %v900 = vsel %vm874, %v894, %v899
      %v902 = vadd.f32 %v817, %v900
      %903 = vset.pattern.permute.xlu0 6
      %904 = vperm.xlu0 %903, %v370
      %v905 = vpop.permute.xlu0 %904
      %v907 = vunpack.c.l.s4 839922192
      %v908 = vunpack.c.0.s8 %v907
      %v909 = vlaneseq
      %v910 = vshrl.u32 %v909, 7
      %v911 = vsub.s32 %v908, %v910
      %v912 = vrot.slane %v905, %v911
      %v914 = vmul.f32 %v850, %v912
      %v915 = vmul.f32 %v851, %v912
      %918 = vrot.lane.b32.xlu0 %v914, 96
      %v919 = vpop.permute.xlu0 %918
      %920 = vrot.lane.b32.xlu0 %v915, 96
      %v921 = vpop.permute.xlu0 %920
      %v922 = vrot.slane %v919, 4
      %v923 = vrot.slane %v921, 4
      %v924 = vsel %vm446, %v922, %v923
      %v925 = vsel %vm874, %v919, %v924
      %v927 = vadd.f32 %v842, %v925
      %928 = vset.pattern.permute.xlu0 7
      %929 = vperm.xlu0 %928, %v366
      %v930 = vpop.permute.xlu0 %929
      %v932 = vunpack.c.l.s4 839922192
      %v933 = vunpack.c.0.s8 %v932
      %v934 = vlaneseq
      %v935 = vshrl.u32 %v934, 7
      %v936 = vsub.s32 %v933, %v935
      %v937 = vrot.slane %v930, %v936
      %v939 = vmul.f32 %v361, %v937
      %v940 = vmul.f32 %v362, %v937
      %943 = vrot.lane.b32.xlu0 %v939, 95
      %v944 = vpop.permute.xlu0 %943
      %945 = vrot.lane.b32.xlu0 %v940, 95
      %v946 = vpop.permute.xlu0 %945
      %v947 = vrot.slane %v944, 4
      %v948 = vrot.slane %v946, 4
      %v949 = vsel %vm446, %v947, %v948
      %vm950 = vcmask 777216
      %v951 = vsel %vm950, %v944, %v949
      %v953 = vadd.f32 %v877, %v951
      %954 = vset.pattern.permute.xlu0 7
      %955 = vperm.xlu0 %954, %v368
      %v956 = vpop.permute.xlu0 %955
      %v958 = vunpack.c.l.s4 839922192
      %v959 = vunpack.c.0.s8 %v958
      %v960 = vlaneseq
      %v961 = vshrl.u32 %v960, 7
      %v962 = vsub.s32 %v959, %v961
      %v963 = vrot.slane %v956, %v962
      %v965 = vmul.f32 %v361, %v963
      %v966 = vmul.f32 %v362, %v963
      %969 = vrot.lane.b32.xlu0 %v965, 95
      %v970 = vpop.permute.xlu0 %969
      %971 = vrot.lane.b32.xlu0 %v966, 95
      %v972 = vpop.permute.xlu0 %971
      %v973 = vrot.slane %v970, 4
      %v974 = vrot.slane %v972, 4
      %v975 = vsel %vm446, %v973, %v974
      %v976 = vsel %vm950, %v970, %v975
      %v978 = vadd.f32 %v902, %v976
      %979 = vset.pattern.permute.xlu0 7
      %980 = vperm.xlu0 %979, %v370
      %v981 = vpop.permute.xlu0 %980
      %v983 = vunpack.c.l.s4 839922192
      %v984 = vunpack.c.0.s8 %v983
      %v985 = vlaneseq
      %v986 = vshrl.u32 %v985, 7
      %v987 = vsub.s32 %v984, %v986
      %v988 = vrot.slane %v981, %v987
      %v990 = vmul.f32 %v361, %v988
      %v991 = vmul.f32 %v362, %v988
      %994 = vrot.lane.b32.xlu0 %v990, 95
      %v995 = vpop.permute.xlu0 %994
      %996 = vrot.lane.b32.xlu0 %v991, 95
      %v997 = vpop.permute.xlu0 %996
      %v998 = vrot.slane %v995, 4
      %v999 = vrot.slane %v997, 4
      %v1000 = vsel %vm446, %v998, %v999
      %v1001 = vsel %vm950, %v995, %v1000
      %v1003 = vadd.f32 %v927, %v1001
      %1004 = vrot.lane.b32.xlu0 %v511, 34
      %v1005 = vpop.permute.xlu0 %1004
      %v1006 = vrot.slane %v1005, 4
      %vm1007 = vcmask 277504
      %v1008 = vsel %vm1007, %v1006, %v1005
      %v1011 = vmul.f32 %v361, %v1008
      %v1012 = vmul.f32 %v362, %v1006
      %1013 = vset.pattern.permute.xlu0 8
      %1014 = vperm.xlu0 %1013, %v366
      %v1015 = vpop.permute.xlu0 %1014
      %v1017 = vunpack.c.l.s4 839922192
      %v1018 = vunpack.c.0.s8 %v1017
      %v1019 = vlaneseq
      %v1020 = vshrl.u32 %v1019, 7
      %v1021 = vsub.s32 %v1018, %v1020
      %v1022 = vrot.slane %v1015, %v1021
      %v1024 = vmul.f32 %v1011, %v1022
      %v1025 = vmul.f32 %v1012, %v1022
      %1028 = vrot.lane.b32.xlu0 %v1024, 94
      %v1029 = vpop.permute.xlu0 %1028
      %1030 = vrot.lane.b32.xlu0 %v1025, 94
      %v1031 = vpop.permute.xlu0 %1030
      %v1032 = vrot.slane %v1029, 4
      %v1033 = vrot.slane %v1031, 4
      %v1034 = vsel %vm446, %v1032, %v1033
      %vm1035 = vcmask 769024
      %v1036 = vsel %vm1035, %v1029, %v1034
      %v1038 = vadd.f32 %v953, %v1036
      %1039 = vset.pattern.permute.xlu0 8
      %1040 = vperm.xlu0 %1039, %v368
      %v1041 = vpop.permute.xlu0 %1040
      %v1043 = vunpack.c.l.s4 839922192
      %v1044 = vunpack.c.0.s8 %v1043
      %v1045 = vlaneseq
      %v1046 = vshrl.u32 %v1045, 7
      %v1047 = vsub.s32 %v1044, %v1046
      %v1048 = vrot.slane %v1041, %v1047
      %v1050 = vmul.f32 %v1011, %v1048
      %v1051 = vmul.f32 %v1012, %v1048
      %1054 = vrot.lane.b32.xlu0 %v1050, 94
      %v1055 = vpop.permute.xlu0 %1054
      %1056 = vrot.lane.b32.xlu0 %v1051, 94
      %v1057 = vpop.permute.xlu0 %1056
      %v1058 = vrot.slane %v1055, 4
      %v1059 = vrot.slane %v1057, 4
      %v1060 = vsel %vm446, %v1058, %v1059
      %v1061 = vsel %vm1035, %v1055, %v1060
      %v1063 = vadd.f32 %v978, %v1061
      %1064 = vset.pattern.permute.xlu0 8
      %1065 = vperm.xlu0 %1064, %v370
      %v1066 = vpop.permute.xlu0 %1065
      %v1068 = vunpack.c.l.s4 839922192
      %v1069 = vunpack.c.0.s8 %v1068
      %v1070 = vlaneseq
      %v1071 = vshrl.u32 %v1070, 7
      %v1072 = vsub.s32 %v1069, %v1071
      %v1073 = vrot.slane %v1066, %v1072
      %v1075 = vmul.f32 %v1011, %v1073
      %v1076 = vmul.f32 %v1012, %v1073
      %1079 = vrot.lane.b32.xlu0 %v1075, 94
      %v1080 = vpop.permute.xlu0 %1079
      %1081 = vrot.lane.b32.xlu0 %v1076, 94
      %v1082 = vpop.permute.xlu0 %1081
      %v1083 = vrot.slane %v1080, 4
      %v1084 = vrot.slane %v1082, 4
      %v1085 = vsel %vm446, %v1083, %v1084
      %v1086 = vsel %vm1035, %v1080, %v1085
      %v1088 = vadd.f32 %v1003, %v1086
      %v1089 = vld [vmem:[%s3] sm:$0xf]
      %1091 = vset.pattern.permute.xlu0 0
      %1092 = vperm.xlu0 %1091, %v1089
      %v1093 = vpop.permute.xlu0 %1092
      %v1095 = vunpack.c.l.s4 839922192
      %v1096 = vunpack.c.0.s8 %v1095
      %v1097 = vlaneseq
      %v1098 = vshrl.u32 %v1097, 7
      %v1099 = vsub.s32 %v1096, %v1098
      %v1100 = vrot.slane %v1093, %v1099
      %v1102 = vadd.f32 %v1038, %v1100
      %v1103 = vmax.f32 %v1102, 0.0
      %v1105 = vcombine.high %v1103, %v1103
      %v1107 = vsel %vm446, %v1103, 0.0
      %v1108 = vrot.slane %v1107, 4
      %v1109 = vadd.f32 %v1107, %v1108
      %v1110 = vrot.slane %v1109, 2
      %v1111 = vadd.f32 %v1109, %v1110
      %v1112 = vrot.slane %v1111, 1
      %v1113 = vadd.f32 %v1111, %v1112
      %v1114 = vsel %vm446, %v1105, 0.0
      %v1115 = vrot.slane %v1114, 4
      %v1116 = vadd.f32 %v1114, %v1115
      %v1117 = vrot.slane %v1116, 2
      %v1118 = vadd.f32 %v1116, %v1117
      %v1119 = vrot.slane %v1118, 1
      %v1120 = vadd.f32 %v1118, %v1119
      %v1121 = vrcp.pop 4.0
      %v1122 = vmul.f32 %v1113, %v1121
      %v1123 = vmul.f32 %v1120, %v1121
      %v1126 = vcombine.low %v1122, %v1123
      %v1128 = vsub.f32 %v1103, %v1126
      %v1129 = vmul.f32 %v1128, %v1128
      %v1131 = vcombine.high %v1129, %v1129
      %v1133 = vsel %vm446, %v1129, 0.0
      %v1134 = vrot.slane %v1133, 4
      %v1135 = vadd.f32 %v1133, %v1134
      %v1136 = vrot.slane %v1135, 2
      %v1137 = vadd.f32 %v1135, %v1136
      %v1138 = vrot.slane %v1137, 1
      %v1139 = vadd.f32 %v1137, %v1138
      %v1140 = vsel %vm446, %v1131, 0.0
      %v1141 = vrot.slane %v1140, 4
      %v1142 = vadd.f32 %v1140, %v1141
      %v1143 = vrot.slane %v1142, 2
      %v1144 = vadd.f32 %v1142, %v1143
      %v1145 = vrot.slane %v1144, 1
      %v1146 = vadd.f32 %v1144, %v1145
      %v1147 = vmul.f32 %v1139, %v1121
      %v1148 = vmul.f32 %v1146, %v1121
      %v1149 = vadd.f32 %v1147, 1e-05
      %v1150 = vadd.f32 %v1148, 1e-05
      %v1151 = vrsqrt.pop %v1149
      %v1152 = vrsqrt.pop %v1150
      %v1155 = vcombine.low %v1151, %v1152
      %v1157 = vmul.f32 %v1128, %v1155
      %v1158 = vld [vmem:[%s4] sm:$0xf]
      %1160 = vset.pattern.permute.xlu0 0
      %1161 = vperm.xlu0 %1160, %v1158
      %v1162 = vpop.permute.xlu0 %1161
      %v1164 = vunpack.c.l.s4 839922192
      %v1165 = vunpack.c.0.s8 %v1164
      %v1166 = vlaneseq
      %v1167 = vshrl.u32 %v1166, 7
      %v1168 = vsub.s32 %v1165, %v1167
      %v1169 = vrot.slane %v1162, %v1168
      %v1171 = vmul.f32 %v1157, %v1169
      %v1172 = vld [vmem:[%s5] sm:$0xf]
      %1174 = vset.pattern.permute.xlu0 0
      %1175 = vperm.xlu0 %1174, %v1172
      %v1176 = vpop.permute.xlu0 %1175
      %v1178 = vunpack.c.l.s4 839922192
      %v1179 = vunpack.c.0.s8 %v1178
      %v1180 = vlaneseq
      %v1181 = vshrl.u32 %v1180, 7
      %v1182 = vsub.s32 %v1179, %v1181
      %v1183 = vrot.slane %v1176, %v1182
      %v1185 = vadd.f32 %v1171, %v1183
      %v1187 = vcombine.high %v1185, %v1185
      %v1189 = vpack.c.bf16 %v1185, %v1185
      %v1190 = vpack.c.bf16 %v1187, %v1187
      %s1191 = scalar_lea.vmem %s3, 4
      %v1192 = vld [vmem:[%s1191] sm:$0xf]
      %1194 = vset.pattern.permute.xlu0 0
      %1195 = vperm.xlu0 %1194, %v1192
      %v1196 = vpop.permute.xlu0 %1195
      %v1198 = vunpack.c.l.s4 839922192
      %v1199 = vunpack.c.0.s8 %v1198
      %v1200 = vlaneseq
      %v1201 = vshrl.u32 %v1200, 7
      %v1202 = vsub.s32 %v1199, %v1201
      %v1203 = vrot.slane %v1196, %v1202
      %v1205 = vadd.f32 %v1063, %v1203
      %v1206 = vmax.f32 %v1205, 0.0
      %v1208 = vcombine.high %v1206, %v1206
      %v1210 = vsel %vm446, %v1206, 0.0
      %v1211 = vrot.slane %v1210, 4
      %v1212 = vadd.f32 %v1210, %v1211
      %v1213 = vrot.slane %v1212, 2
      %v1214 = vadd.f32 %v1212, %v1213
      %v1215 = vrot.slane %v1214, 1
      %v1216 = vadd.f32 %v1214, %v1215
      %v1217 = vsel %vm446, %v1208, 0.0
      %v1218 = vrot.slane %v1217, 4
      %v1219 = vadd.f32 %v1217, %v1218
      %v1220 = vrot.slane %v1219, 2
      %v1221 = vadd.f32 %v1219, %v1220
      %v1222 = vrot.slane %v1221, 1
      %v1223 = vadd.f32 %v1221, %v1222
      %v1224 = vmul.f32 %v1216, %v1121
      %v1225 = vmul.f32 %v1223, %v1121
      %v1228 = vcombine.low %v1224, %v1225
      %v1230 = vsub.f32 %v1206, %v1228
      %v1231 = vmul.f32 %v1230, %v1230
      %v1233 = vcombine.high %v1231, %v1231
      %v1235 = vsel %vm446, %v1231, 0.0
      %v1236 = vrot.slane %v1235, 4
      %v1237 = vadd.f32 %v1235, %v1236
      %v1238 = vrot.slane %v1237, 2
      %v1239 = vadd.f32 %v1237, %v1238
      %v1240 = vrot.slane %v1239, 1
      %v1241 = vadd.f32 %v1239, %v1240
      %v1242 = vsel %vm446, %v1233, 0.0
      %v1243 = vrot.slane %v1242, 4
      %v1244 = vadd.f32 %v1242, %v1243
      %v1245 = vrot.slane %v1244, 2
      %v1246 = vadd.f32 %v1244, %v1245
      %v1247 = vrot.slane %v1246, 1
      %v1248 = vadd.f32 %v1246, %v1247
      %v1249 = vmul.f32 %v1241, %v1121
      %v1250 = vmul.f32 %v1248, %v1121
      %v1251 = vadd.f32 %v1249, 1e-05
      %v1252 = vadd.f32 %v1250, 1e-05
      %v1253 = vrsqrt.pop %v1251
      %v1254 = vrsqrt.pop %v1252
      %v1257 = vcombine.low %v1253, %v1254
      %v1259 = vmul.f32 %v1230, %v1257
      %s1260 = scalar_lea.vmem %s4, 4
      %v1261 = vld [vmem:[%s1260] sm:$0xf]
      %1263 = vset.pattern.permute.xlu0 0
      %1264 = vperm.xlu0 %1263, %v1261
      %v1265 = vpop.permute.xlu0 %1264
      %v1267 = vunpack.c.l.s4 839922192
      %v1268 = vunpack.c.0.s8 %v1267
      %v1269 = vlaneseq
      %v1270 = vshrl.u32 %v1269, 7
      %v1271 = vsub.s32 %v1268, %v1270
      %v1272 = vrot.slane %v1265, %v1271
      %v1274 = vmul.f32 %v1259, %v1272
      %s1275 = scalar_lea.vmem %s5, 4
      %v1276 = vld [vmem:[%s1275] sm:$0xf]
      %1278 = vset.pattern.permute.xlu0 0
      %1279 = vperm.xlu0 %1278, %v1276
      %v1280 = vpop.permute.xlu0 %1279
      %v1282 = vunpack.c.l.s4 839922192
      %v1283 = vunpack.c.0.s8 %v1282
      %v1284 = vlaneseq
      %v1285 = vshrl.u32 %v1284, 7
      %v1286 = vsub.s32 %v1283, %v1285
      %v1287 = vrot.slane %v1280, %v1286
      %v1289 = vadd.f32 %v1274, %v1287
      %v1291 = vcombine.high %v1289, %v1289
      %v1293 = vpack.c.bf16 %v1289, %v1289
      %v1294 = vpack.c.bf16 %v1291, %v1291
      %s1295 = scalar_lea.vmem %s3, 8
      %v1296 = vld [vmem:[%s1295] sm:$0xf]
      %1298 = vset.pattern.permute.xlu0 0
      %1299 = vperm.xlu0 %1298, %v1296
      %v1300 = vpop.permute.xlu0 %1299
      %v1302 = vunpack.c.l.s4 839922192
      %v1303 = vunpack.c.0.s8 %v1302
      %v1304 = vlaneseq
      %v1305 = vshrl.u32 %v1304, 7
      %v1306 = vsub.s32 %v1303, %v1305
      %v1307 = vrot.slane %v1300, %v1306
      %v1309 = vadd.f32 %v1088, %v1307
      %v1310 = vmax.f32 %v1309, 0.0
      %v1312 = vcombine.high %v1310, %v1310
      %v1314 = vsel %vm446, %v1310, 0.0
      %v1315 = vrot.slane %v1314, 4
      %v1316 = vadd.f32 %v1314, %v1315
      %v1317 = vrot.slane %v1316, 2
      %v1318 = vadd.f32 %v1316, %v1317
      %v1319 = vrot.slane %v1318, 1
      %v1320 = vadd.f32 %v1318, %v1319
      %v1321 = vsel %vm446, %v1312, 0.0
      %v1322 = vrot.slane %v1321, 4
      %v1323 = vadd.f32 %v1321, %v1322
      %v1324 = vrot.slane %v1323, 2
      %v1325 = vadd.f32 %v1323, %v1324
      %v1326 = vrot.slane %v1325, 1
      %v1327 = vadd.f32 %v1325, %v1326
      %v1328 = vmul.f32 %v1320, %v1121
      %v1329 = vmul.f32 %v1327, %v1121
      %v1332 = vcombine.low %v1328, %v1329
      %v1334 = vsub.f32 %v1310, %v1332
      %v1335 = vmul.f32 %v1334, %v1334
      %v1337 = vcombine.high %v1335, %v1335
      %v1339 = vsel %vm446, %v1335, 0.0
      %v1340 = vrot.slane %v1339, 4
      %v1341 = vadd.f32 %v1339, %v1340
      %v1342 = vrot.slane %v1341, 2
      %v1343 = vadd.f32 %v1341, %v1342
      %v1344 = vrot.slane %v1343, 1
      %v1345 = vadd.f32 %v1343, %v1344
      %v1346 = vsel %vm446, %v1337, 0.0
      %v1347 = vrot.slane %v1346, 4
      %v1348 = vadd.f32 %v1346, %v1347
      %v1349 = vrot.slane %v1348, 2
      %v1350 = vadd.f32 %v1348, %v1349
      %v1351 = vrot.slane %v1350, 1
      %v1352 = vadd.f32 %v1350, %v1351
      %v1353 = vmul.f32 %v1345, %v1121
      %v1354 = vmul.f32 %v1352, %v1121
      %v1355 = vadd.f32 %v1353, 1e-05
      %v1356 = vadd.f32 %v1354, 1e-05
      %v1357 = vrsqrt.pop %v1355
      %v1358 = vrsqrt.pop %v1356
      %v1361 = vcombine.low %v1357, %v1358
      %v1363 = vmul.f32 %v1334, %v1361
      %s1364 = scalar_lea.vmem %s4, 8
      %v1365 = vld [vmem:[%s1364] sm:$0xf]
      %1367 = vset.pattern.permute.xlu0 0
      %1368 = vperm.xlu0 %1367, %v1365
      %v1369 = vpop.permute.xlu0 %1368
      %v1371 = vunpack.c.l.s4 839922192
      %v1372 = vunpack.c.0.s8 %v1371
      %v1373 = vlaneseq
      %v1374 = vshrl.u32 %v1373, 7
      %v1375 = vsub.s32 %v1372, %v1374
      %v1376 = vrot.slane %v1369, %v1375
      %v1378 = vmul.f32 %v1363, %v1376
      %s1379 = scalar_lea.vmem %s5, 8
      %v1380 = vld [vmem:[%s1379] sm:$0xf]
      %1382 = vset.pattern.permute.xlu0 0
      %1383 = vperm.xlu0 %1382, %v1380
      %v1384 = vpop.permute.xlu0 %1383
      %v1386 = vunpack.c.l.s4 839922192
      %v1387 = vunpack.c.0.s8 %v1386
      %v1388 = vlaneseq
      %v1389 = vshrl.u32 %v1388, 7
      %v1390 = vsub.s32 %v1387, %v1389
      %v1391 = vrot.slane %v1384, %v1390
      %v1393 = vadd.f32 %v1378, %v1391
      %v1395 = vcombine.high %v1393, %v1393
      %v1397 = vpack.c.bf16 %v1393, %v1393
      %v1398 = vpack.c.bf16 %v1395, %v1395
      %v1399 = vld [vmem:[%s6] sm:$0x3]
      %v1400 = vld [vmem:[%s7] sm:$0xf]
      %1402 = vset.pattern.permute.xlu0 0
      %1403 = vperm.xlu0 %1402, %v1400
      %v1404 = vpop.permute.xlu0 %1403
      %vm1406 = vcmask 31744
      %v1408 = vsel %vm1406, %v1399, 0
      %vm1410 = vcmask 1041408
      %v1412 = vsel %vm1410, %v1189, 0
      %v1415 = vsel %vm1410, %v1190, 0
      %1417 = vmatprep.subr.bf16.mxu0 %v1415
      %1418 = vmatpush1.bf16.msra.mxu0 %v1412
      %1419 = vmatprep.subr.bf16.mxu0 0
      %1420 = vmatpush1.bf16.msra.mxu0 0
      %1421 = vmatprep.subr.bf16.mxu0 0
      %1422 = vmatpush1.bf16.msra.mxu0 0
      %1423 = vmatprep.subr.bf16.mxu0 0
      %1424 = vmatpush1.bf16.msra.mxu0 0
      %1425 = vmatprep.subr.bf16.mxu0 0
      %1426 = vmatpush1.bf16.msra.mxu0 0
      %1427 = vmatprep.subr.bf16.mxu0 0
      %1428 = vmatpush1.bf16.msra.mxu0 0
      %1429 = vmatprep.subr.bf16.mxu0 0
      %1430 = vmatpush1.bf16.msra.mxu0 0
      %1431 = vmatprep.subr.bf16.mxu0 0
      %1432 = vmatpush1.bf16.msra.mxu0 0
      %1433 = vmatprep.subr.bf16.mxu0 0
      %1434 = vmatpush1.bf16.msra.mxu0 0
      %1435 = vmatprep.subr.bf16.mxu0 0
      %1436 = vmatpush1.bf16.msra.mxu0 0
      %1437 = vmatprep.subr.bf16.mxu0 0
      %1438 = vmatpush1.bf16.msra.mxu0 0
      %1439 = vmatprep.subr.bf16.mxu0 0
      %1440 = vmatpush1.bf16.msra.mxu0 0
      %1441 = vmatprep.subr.bf16.mxu0 0
      %1442 = vmatpush1.bf16.msra.mxu0 0
      %1443 = vmatprep.subr.bf16.mxu0 0
      %1444 = vmatpush1.bf16.msra.mxu0 0
      %1445 = vmatprep.subr.bf16.mxu0 0
      %1446 = vmatpush1.bf16.msra.mxu0 0
      %1447 = vmatprep.subr.bf16.mxu0 0
      %1448 = vmatpush1.bf16.msra.mxu0 0
      %1449 = vmatprep.mubr.bf16.mxu0 0
      %1450 = vmatmul.mubr.bf16.gmra.mrb[0].mxu0 %v1408
      %v1451 = vpop.f32.mrb[0].mxu0
      %v1452 = vadd.f32 %v1404, %v1451
      %v1453 = vpop.f32.mrb[0].mxu0
      %v1454 = vadd.f32 %v1404, %v1453
      %v1455 = vpop.f32.mrb[0].mxu0
      %v1456 = vpop.f32.mrb[0].mxu0
      %1457 = vdwg.mxu0
      %v1458 = vpack.c.bf16 %v1452, %v1452
      %v1459 = vpack.c.bf16 %v1454, %v1454
      %s1460 = scalar_lea.vmem %s6, 2
      %v1461 = vld [vmem:[%s1460] sm:$0x3]
      %s1462 = scalar_lea.vmem %s7, 4
      %v1463 = vld [vmem:[%s1462] sm:$0xf]
      %1465 = vset.pattern.permute.xlu0 0
      %1466 = vperm.xlu0 %1465, %v1463
      %v1467 = vpop.permute.xlu0 %1466
      %v1470 = vsel %vm1406, %v1461, 0
      %v1473 = vsel %vm1410, %v1293, 0
      %v1476 = vsel %vm1410, %v1294, 0
      %1478 = vmatprep.subr.bf16.mxu0 %v1476
      %1479 = vmatpush1.bf16.msra.mxu0 %v1473
      %1480 = vmatprep.subr.bf16.mxu0 0
      %1481 = vmatpush1.bf16.msra.mxu0 0
      %1482 = vmatprep.subr.bf16.mxu0 0
      %1483 = vmatpush1.bf16.msra.mxu0 0
      %1484 = vmatprep.subr.bf16.mxu0 0
      %1485 = vmatpush1.bf16.msra.mxu0 0
      %1486 = vmatprep.subr.bf16.mxu0 0
      %1487 = vmatpush1.bf16.msra.mxu0 0
      %1488 = vmatprep.subr.bf16.mxu0 0
      %1489 = vmatpush1.bf16.msra.mxu0 0
      %1490 = vmatprep.subr.bf16.mxu0 0
      %1491 = vmatpush1.bf16.msra.mxu0 0
      %1492 = vmatprep.subr.bf16.mxu0 0
      %1493 = vmatpush1.bf16.msra.mxu0 0
      %1494 = vmatprep.subr.bf16.mxu0 0
      %1495 = vmatpush1.bf16.msra.mxu0 0
      %1496 = vmatprep.subr.bf16.mxu0 0
      %1497 = vmatpush1.bf16.msra.mxu0 0
      %1498 = vmatprep.subr.bf16.mxu0 0
      %1499 = vmatpush1.bf16.msra.mxu0 0
      %1500 = vmatprep.subr.bf16.mxu0 0
      %1501 = vmatpush1.bf16.msra.mxu0 0
      %1502 = vmatprep.subr.bf16.mxu0 0
      %1503 = vmatpush1.bf16.msra.mxu0 0
      %1504 = vmatprep.subr.bf16.mxu0 0
      %1505 = vmatpush1.bf16.msra.mxu0 0
      %1506 = vmatprep.subr.bf16.mxu0 0
      %1507 = vmatpush1.bf16.msra.mxu0 0
      %1508 = vmatprep.subr.bf16.mxu0 0
      %1509 = vmatpush1.bf16.msra.mxu0 0
      %1510 = vmatprep.mubr.bf16.mxu0 0
      %1511 = vmatmul.mubr.bf16.gmra.mrb[0].mxu0 %v1470
      %v1512 = vpop.f32.mrb[0].mxu0
      %v1513 = vadd.f32 %v1467, %v1512
      %v1514 = vpop.f32.mrb[0].mxu0
      %v1515 = vadd.f32 %v1467, %v1514
      %v1516 = vpop.f32.mrb[0].mxu0
      %v1517 = vpop.f32.mrb[0].mxu0
      %1518 = vdwg.mxu0
      %v1519 = vpack.c.bf16 %v1513, %v1513
      %v1520 = vpack.c.bf16 %v1515, %v1515
      %s1521 = scalar_lea.vmem %s6, 4
      %v1522 = vld [vmem:[%s1521] sm:$0x3]
      %s1523 = scalar_lea.vmem %s7, 8
      %v1524 = vld [vmem:[%s1523] sm:$0xf]
      %1526 = vset.pattern.permute.xlu0 0
      %1527 = vperm.xlu0 %1526, %v1524
      %v1528 = vpop.permute.xlu0 %1527
      %v1531 = vsel %vm1406, %v1522, 0
      %v1534 = vsel %vm1410, %v1397, 0
      %v1537 = vsel %vm1410, %v1398, 0
      %1539 = vmatprep.subr.bf16.mxu0 %v1537
      %1540 = vmatpush1.bf16.msra.mxu0 %v1534
      %1541 = vmatprep.subr.bf16.mxu0 0
      %1542 = vmatpush1.bf16.msra.mxu0 0
      %1543 = vmatprep.subr.bf16.mxu0 0
      %1544 = vmatpush1.bf16.msra.mxu0 0
      %1545 = vmatprep.subr.bf16.mxu0 0
      %1546 = vmatpush1.bf16.msra.mxu0 0
      %1547 = vmatprep.subr.bf16.mxu0 0
      %1548 = vmatpush1.bf16.msra.mxu0 0
      %1549 = vmatprep.subr.bf16.mxu0 0
      %1550 = vmatpush1.bf16.msra.mxu0 0
      %1551 = vmatprep.subr.bf16.mxu0 0
      %1552 = vmatpush1.bf16.msra.mxu0 0
      %1553 = vmatprep.subr.bf16.mxu0 0
      %1554 = vmatpush1.bf16.msra.mxu0 0
      %1555 = vmatprep.subr.bf16.mxu0 0
      %1556 = vmatpush1.bf16.msra.mxu0 0
      %1557 = vmatprep.subr.bf16.mxu0 0
      %1558 = vmatpush1.bf16.msra.mxu0 0
      %1559 = vmatprep.subr.bf16.mxu0 0
      %1560 = vmatpush1.bf16.msra.mxu0 0
      %1561 = vmatprep.subr.bf16.mxu0 0
      %1562 = vmatpush1.bf16.msra.mxu0 0
      %1563 = vmatprep.subr.bf16.mxu0 0
      %1564 = vmatpush1.bf16.msra.mxu0 0
      %1565 = vmatprep.subr.bf16.mxu0 0
      %1566 = vmatpush1.bf16.msra.mxu0 0
      %1567 = vmatprep.subr.bf16.mxu0 0
      %1568 = vmatpush1.bf16.msra.mxu0 0
      %1569 = vmatprep.subr.bf16.mxu0 0
      %1570 = vmatpush1.bf16.msra.mxu0 0
      %1571 = vmatprep.mubr.bf16.mxu0 0
      %1572 = vmatmul.mubr.bf16.gmra.mrb[0].mxu0 %v1531
      %v1573 = vpop.f32.mrb[0].mxu0
      %v1574 = vadd.f32 %v1528, %v1573
      %v1575 = vpop.f32.mrb[0].mxu0
      %v1576 = vadd.f32 %v1528, %v1575
      %v1577 = vpop.f32.mrb[0].mxu0
      %v1578 = vpop.f32.mrb[0].mxu0
      %1579 = vdwg.mxu0
      %v1580 = vpack.c.bf16 %v1574, %v1574
      %v1581 = vpack.c.bf16 %v1576, %v1576
      %v1582 = vld [vmem:[%s8] sm:$0x3]
      %v1583 = vld [vmem:[%s9] sm:$0xf]
      %1584 = vxpose.xlu0.c.b16.start [1/8] %v1519, 128
      %1585 = vxpose.xlu0.c.b16.cont [2/8] 0, 128
      %1586 = vxpose.xlu0.c.b16.cont [3/8] 0, 128
      %1587 = vxpose.xlu0.c.b16.cont [4/8] 0, 128
      %1588 = vxpose.xlu0.c.b16.cont [5/8] 0, 128
      %1589 = vxpose.xlu0.c.b16.cont [6/8] 0, 128
      %1590 = vxpose.xlu0.c.b16.cont [7/8] 0, 128
      %1591 = vxpose.xlu0.c.b16.end [8/8] 0, 128
      %v1592 = vpop.trf.xlu0
      %v1593 = vpop.trf.xlu0
      %v1594 = vpop.trf.xlu0
      %v1595 = vpop.trf.xlu0
      %v1596 = vpop.trf.xlu0
      %v1597 = vpop.trf.xlu0
      %v1598 = vpop.trf.xlu0
      %v1599 = vpop.trf.xlu0
      %1600 = vxpose.xlu0.c.b16.start [1/8] %v1520, 128
      %1601 = vxpose.xlu0.c.b16.cont [2/8] 0, 128
      %1602 = vxpose.xlu0.c.b16.cont [3/8] 0, 128
      %1603 = vxpose.xlu0.c.b16.cont [4/8] 0, 128
      %1604 = vxpose.xlu0.c.b16.cont [5/8] 0, 128
      %1605 = vxpose.xlu0.c.b16.cont [6/8] 0, 128
      %1606 = vxpose.xlu0.c.b16.cont [7/8] 0, 128
      %1607 = vxpose.xlu0.c.b16.end [8/8] 0, 128
      %v1608 = vpop.trf.xlu0
      %v1609 = vpop.trf.xlu0
      %v1610 = vpop.trf.xlu0
      %v1611 = vpop.trf.xlu0
      %v1612 = vpop.trf.xlu0
      %v1613 = vpop.trf.xlu0
      %v1614 = vpop.trf.xlu0
      %v1615 = vpop.trf.xlu0
      %v1617 = vsel %vm1406, %v1592, 0
      %v1620 = vsel %vm1406, %v1593, 0
      %v1623 = vsel %vm1406, %v1594, 0
      %v1626 = vsel %vm1406, %v1595, 0
      %v1629 = vsel %vm1406, %v1596, 0
      %v1632 = vsel %vm1406, %v1597, 0
      %v1635 = vsel %vm1406, %v1598, 0
      %v1638 = vsel %vm1406, %v1599, 0
      %v1641 = vsel %vm1406, %v1608, 0
      %v1644 = vsel %vm1406, %v1609, 0
      %v1647 = vsel %vm1406, %v1610, 0
      %v1650 = vsel %vm1406, %v1611, 0
      %v1653 = vsel %vm1406, %v1612, 0
      %v1656 = vsel %vm1406, %v1613, 0
      %v1659 = vsel %vm1406, %v1614, 0
      %v1662 = vsel %vm1406, %v1615, 0
      %v1665 = vsel %vm1410, %v1458, 0
      %1667 = vmatprep.subr.bf16.mxu0 0
      %1668 = vmatpush1.bf16.msra.mxu0 %v1665
      %1669 = vmatprep.subr.bf16.mxu0 0
      %1670 = vmatpush1.bf16.msra.mxu0 0
      %1671 = vmatprep.subr.bf16.mxu0 0
      %1672 = vmatpush1.bf16.msra.mxu0 0
      %1673 = vmatprep.subr.bf16.mxu0 0
      %1674 = vmatpush1.bf16.msra.mxu0 0
      %1675 = vmatprep.subr.bf16.mxu0 0
      %1676 = vmatpush1.bf16.msra.mxu0 0
      %1677 = vmatprep.subr.bf16.mxu0 0
      %1678 = vmatpush1.bf16.msra.mxu0 0
      %1679 = vmatprep.subr.bf16.mxu0 0
      %1680 = vmatpush1.bf16.msra.mxu0 0
      %1681 = vmatprep.subr.bf16.mxu0 0
      %1682 = vmatpush1.bf16.msra.mxu0 0
      %1683 = vmatprep.subr.bf16.mxu0 0
      %1684 = vmatpush1.bf16.msra.mxu0 0
      %1685 = vmatprep.subr.bf16.mxu0 0
      %1686 = vmatpush1.bf16.msra.mxu0 0
      %1687 = vmatprep.subr.bf16.mxu0 0
      %1688 = vmatpush1.bf16.msra.mxu0 0
      %1689 = vmatprep.subr.bf16.mxu0 0
      %1690 = vmatpush1.bf16.msra.mxu0 0
      %1691 = vmatprep.subr.bf16.mxu0 0
      %1692 = vmatpush1.bf16.msra.mxu0 0
      %1693 = vmatprep.subr.bf16.mxu0 0
      %1694 = vmatpush1.bf16.msra.mxu0 0
      %1695 = vmatprep.subr.bf16.mxu0 0
      %1696 = vmatpush1.bf16.msra.mxu0 0
      %1697 = vmatprep.subr.bf16.mxu0 0
      %1698 = vmatpush1.bf16.msra.mxu0 0
      %1699 = vmatprep.mubr.bf16.mxu0 0
      %1700 = vmatmul.mubr.bf16.gmra.mrb[0].mxu0 %v1617
      %v1701 = vpop.f32.mrb[0].mxu0
      %v1702 = vadd.f32 0.0, %v1701
      %v1703 = vpop.f32.mrb[0].mxu0
      %v1704 = vpop.f32.mrb[0].mxu0
      %v1705 = vadd.f32 0.0, %v1704
      %v1706 = vpop.f32.mrb[0].mxu0
      %1707 = vmatprep.mubr.bf16.mxu0 0
      %1708 = vmatmul.mubr.bf16.gmra.mrb[0].mxu0 %v1620
      %v1709 = vpop.f32.mrb[0].mxu0
      %v1710 = vadd.f32 0.0, %v1709
      %v1711 = vpop.f32.mrb[0].mxu0
      %v1712 = vpop.f32.mrb[0].mxu0
      %v1713 = vadd.f32 0.0, %v1712
      %v1714 = vpop.f32.mrb[0].mxu0
      %1715 = vmatprep.mubr.bf16.mxu0 0
      %1716 = vmatmul.mubr.bf16.gmra.mrb[0].mxu0 %v1623
      %v1717 = vpop.f32.mrb[0].mxu0
      %v1718 = vadd.f32 0.0, %v1717
      %v1719 = vpop.f32.mrb[0].mxu0
      %v1720 = vpop.f32.mrb[0].mxu0
      %v1721 = vadd.f32 0.0, %v1720
      %v1722 = vpop.f32.mrb[0].mxu0
      %1723 = vmatprep.mubr.bf16.mxu0 0
      %1724 = vmatmul.mubr.bf16.gmra.mrb[0].mxu0 %v1626
      %v1725 = vpop.f32.mrb[0].mxu0
      %v1726 = vadd.f32 0.0, %v1725
      %v1727 = vpop.f32.mrb[0].mxu0
      %v1728 = vpop.f32.mrb[0].mxu0
      %v1729 = vadd.f32 0.0, %v1728
      %v1730 = vpop.f32.mrb[0].mxu0
      %1731 = vmatprep.mubr.bf16.mxu0 0
      %1732 = vmatmul.mubr.bf16.gmra.mrb[0].mxu0 %v1629
      %v1733 = vpop.f32.mrb[0].mxu0
      %v1734 = vadd.f32 0.0, %v1733
      %v1735 = vpop.f32.mrb[0].mxu0
      %v1736 = vpop.f32.mrb[0].mxu0
      %v1737 = vadd.f32 0.0, %v1736
      %v1738 = vpop.f32.mrb[0].mxu0
      %1739 = vmatprep.mubr.bf16.mxu0 0
      %1740 = vmatmul.mubr.bf16.gmra.mrb[0].mxu0 %v1632
      %v1741 = vpop.f32.mrb[0].mxu0
      %v1742 = vadd.f32 0.0, %v1741
      %v1743 = vpop.f32.mrb[0].mxu0
      %v1744 = vpop.f32.mrb[0].mxu0
      %v1745 = vadd.f32 0.0, %v1744
      %v1746 = vpop.f32.mrb[0].mxu0
      %1747 = vmatprep.mubr.bf16.mxu0 0
      %1748 = vmatmul.mubr.bf16.gmra.mrb[0].mxu0 %v1635
      %v1749 = vpop.f32.mrb[0].mxu0
      %v1750 = vadd.f32 0.0, %v1749
      %v1751 = vpop.f32.mrb[0].mxu0
      %v1752 = vpop.f32.mrb[0].mxu0
      %v1753 = vadd.f32 0.0, %v1752
      %v1754 = vpop.f32.mrb[0].mxu0
      %1755 = vmatprep.mubr.bf16.mxu0 0
      %1756 = vmatmul.mubr.bf16.gmra.mrb[0].mxu0 %v1638
      %v1757 = vpop.f32.mrb[0].mxu0
      %v1758 = vadd.f32 0.0, %v1757
      %v1759 = vpop.f32.mrb[0].mxu0
      %v1760 = vpop.f32.mrb[0].mxu0
      %v1761 = vadd.f32 0.0, %v1760
      %v1762 = vpop.f32.mrb[0].mxu0
      %1763 = vmatprep.mubr.bf16.mxu0 0
      %1764 = vmatmul.mubr.bf16.gmra.mrb[0].mxu0 %v1641
      %v1765 = vpop.f32.mrb[0].mxu0
      %v1766 = vadd.f32 0.0, %v1765
      %v1767 = vpop.f32.mrb[0].mxu0
      %v1768 = vpop.f32.mrb[0].mxu0
      %v1769 = vadd.f32 0.0, %v1768
      %v1770 = vpop.f32.mrb[0].mxu0
      %1771 = vmatprep.mubr.bf16.mxu0 0
      %1772 = vmatmul.mubr.bf16.gmra.mrb[0].mxu0 %v1644
      %v1773 = vpop.f32.mrb[0].mxu0
      %v1774 = vadd.f32 0.0, %v1773
      %v1775 = vpop.f32.mrb[0].mxu0
      %v1776 = vpop.f32.mrb[0].mxu0
      %v1777 = vadd.f32 0.0, %v1776
      %v1778 = vpop.f32.mrb[0].mxu0
      %1779 = vmatprep.mubr.bf16.mxu0 0
      %1780 = vmatmul.mubr.bf16.gmra.mrb[0].mxu0 %v1647
      %v1781 = vpop.f32.mrb[0].mxu0
      %v1782 = vadd.f32 0.0, %v1781
      %v1783 = vpop.f32.mrb[0].mxu0
      %v1784 = vpop.f32.mrb[0].mxu0
      %v1785 = vadd.f32 0.0, %v1784
      %v1786 = vpop.f32.mrb[0].mxu0
      %1787 = vmatprep.mubr.bf16.mxu0 0
      %1788 = vmatmul.mubr.bf16.gmra.mrb[0].mxu0 %v1650
      %v1789 = vpop.f32.mrb[0].mxu0
      %v1790 = vadd.f32 0.0, %v1789
      %v1791 = vpop.f32.mrb[0].mxu0
      %v1792 = vpop.f32.mrb[0].mxu0
      %v1793 = vadd.f32 0.0, %v1792
      %v1794 = vpop.f32.mrb[0].mxu0
      %1795 = vmatprep.mubr.bf16.mxu0 0
      %1796 = vmatmul.mubr.bf16.gmra.mrb[0].mxu0 %v1653
      %v1797 = vpop.f32.mrb[0].mxu0
      %v1798 = vadd.f32 0.0, %v1797
      %v1799 = vpop.f32.mrb[0].mxu0
      %v1800 = vpop.f32.mrb[0].mxu0
      %v1801 = vadd.f32 0.0, %v1800
      %v1802 = vpop.f32.mrb[0].mxu0
      %1803 = vmatprep.mubr.bf16.mxu0 0
      %1804 = vmatmul.mubr.bf16.gmra.mrb[0].mxu0 %v1656
      %v1805 = vpop.f32.mrb[0].mxu0
      %v1806 = vadd.f32 0.0, %v1805
      %v1807 = vpop.f32.mrb[0].mxu0
      %v1808 = vpop.f32.mrb[0].mxu0
      %v1809 = vadd.f32 0.0, %v1808
      %v1810 = vpop.f32.mrb[0].mxu0
      %1811 = vmatprep.mubr.bf16.mxu0 0
      %1812 = vmatmul.mubr.bf16.gmra.mrb[0].mxu0 %v1659
      %v1813 = vpop.f32.mrb[0].mxu0
      %v1814 = vadd.f32 0.0, %v1813
      %v1815 = vpop.f32.mrb[0].mxu0
      %v1816 = vpop.f32.mrb[0].mxu0
      %v1817 = vadd.f32 0.0, %v1816
      %v1818 = vpop.f32.mrb[0].mxu0
      %1819 = vmatprep.mubr.bf16.mxu0 0
      %1820 = vmatmul.mubr.bf16.gmra.mrb[0].mxu0 %v1662
      %v1821 = vpop.f32.mrb[0].mxu0
      %v1822 = vadd.f32 0.0, %v1821
      %v1823 = vpop.f32.mrb[0].mxu0
      %v1824 = vpop.f32.mrb[0].mxu0
      %v1825 = vadd.f32 0.0, %v1824
      %v1826 = vpop.f32.mrb[0].mxu0
      %1827 = vdwg.mxu0
      %v1828 = vmax.f32 %v1702, %v1718
      %v1829 = vmax.f32 %v1705, %v1721
      %v1830 = vmax.f32 %v1710, %v1726
      %v1831 = vmax.f32 %v1713, %v1729
      %v1832 = vmax.f32 %v1828, %v1734
      %v1833 = vmax.f32 %v1829, %v1737
      %v1834 = vmax.f32 %v1830, %v1742
      %v1835 = vmax.f32 %v1831, %v1745
      %v1836 = vmax.f32 %v1832, %v1750
      %v1837 = vmax.f32 %v1833, %v1753
      %v1838 = vmax.f32 %v1834, %v1758
      %v1839 = vmax.f32 %v1835, %v1761
      %v1840 = vmax.f32 %v1836, %v1766
      %v1841 = vmax.f32 %v1837, %v1769
      %v1842 = vmax.f32 %v1838, %v1774
      %v1843 = vmax.f32 %v1839, %v1777
      %v1844 = vmax.f32 %v1840, %v1782
      %v1845 = vmax.f32 %v1841, %v1785
      %v1846 = vmax.f32 %v1842, %v1790
      %v1847 = vmax.f32 %v1843, %v1793
      %v1848 = vmax.f32 %v1844, %v1798
      %v1849 = vmax.f32 %v1845, %v1801
      %v1850 = vmax.f32 %v1846, %v1806
      %v1851 = vmax.f32 %v1847, %v1809
      %v1852 = vmax.f32 %v1848, %v1814
      %v1853 = vmax.f32 %v1849, %v1817
      %v1854 = vmax.f32 %v1850, %v1822
      %v1855 = vmax.f32 %v1851, %v1825
      %v1856 = vmax.f32 %v1852, %v1853
      %v1857 = vmax.f32 %v1854, %v1855
      %v1858 = vmax.f32 %v1856, %v1857
      %v1859 = vrot.slane %v1858, 4
      %v1860 = vmax.f32 %v1858, %v1859
      %v1861 = vrot.slane %v1860, 2
      %v1862 = vmax.f32 %v1860, %v1861
      %v1863 = vrot.slane %v1862, 1
      %v1864 = vmax.f32 %v1862, %v1863
      %v1865 = vsub.f32 %v1702, %v1864
      %v1866 = vsub.f32 %v1705, %v1864
      %v1867 = vsub.f32 %v1710, %v1864
      %v1868 = vsub.f32 %v1713, %v1864
      %v1869 = vsub.f32 %v1718, %v1864
      %v1870 = vsub.f32 %v1721, %v1864
      %v1871 = vsub.f32 %v1726, %v1864
      %v1872 = vsub.f32 %v1729, %v1864
      %v1873 = vsub.f32 %v1734, %v1864
      %v1874 = vsub.f32 %v1737, %v1864
      %v1875 = vsub.f32 %v1742, %v1864
      %v1876 = vsub.f32 %v1745, %v1864
      %v1877 = vsub.f32 %v1750, %v1864
      %v1878 = vsub.f32 %v1753, %v1864
      %v1879 = vsub.f32 %v1758, %v1864
      %v1880 = vsub.f32 %v1761, %v1864
      %v1881 = vsub.f32 %v1766, %v1864
      %v1882 = vsub.f32 %v1769, %v1864
      %v1883 = vsub.f32 %v1774, %v1864
      %v1884 = vsub.f32 %v1777, %v1864
      %v1885 = vsub.f32 %v1782, %v1864
      %v1886 = vsub.f32 %v1785, %v1864
      %v1887 = vsub.f32 %v1790, %v1864
      %v1888 = vsub.f32 %v1793, %v1864
      %v1889 = vsub.f32 %v1798, %v1864
      %v1890 = vsub.f32 %v1801, %v1864
      %v1891 = vsub.f32 %v1806, %v1864
      %v1892 = vsub.f32 %v1809, %v1864
      %v1893 = vsub.f32 %v1814, %v1864
      %v1894 = vsub.f32 %v1817, %v1864
      %v1895 = vsub.f32 %v1822, %v1864
      %v1896 = vsub.f32 %v1825, %v1864
      %v1897 = vmul.f32 %v1865, 1.442695
      %v1898 = vpow.pop %v1897
      %v1899 = vmul.f32 %v1866, 1.442695
      %v1900 = vpow.pop %v1899
      %v1901 = vmul.f32 %v1867, 1.442695
      %v1902 = vpow.pop %v1901
      %v1903 = vmul.f32 %v1868, 1.442695
      %v1904 = vpow.pop %v1903
      %v1905 = vmul.f32 %v1869, 1.442695
      %v1906 = vpow.pop %v1905
      %v1907 = vmul.f32 %v1870, 1.442695
      %v1908 = vpow.pop %v1907
      %v1909 = vmul.f32 %v1871, 1.442695
      %v1910 = vpow.pop %v1909
      %v1911 = vmul.f32 %v1872, 1.442695
      %v1912 = vpow.pop %v1911
      %v1913 = vmul.f32 %v1873, 1.442695
      %v1914 = vpow.pop %v1913
      %v1915 = vmul.f32 %v1874, 1.442695
      %v1916 = vpow.pop %v1915
      %v1917 = vmul.f32 %v1875, 1.442695
      %v1918 = vpow.pop %v1917
      %v1919 = vmul.f32 %v1876, 1.442695
      %v1920 = vpow.pop %v1919
      %v1921 = vmul.f32 %v1877, 1.442695
      %v1922 = vpow.pop %v1921
      %v1923 = vmul.f32 %v1878, 1.442695
      %v1924 = vpow.pop %v1923
      %v1925 = vmul.f32 %v1879, 1.442695
      %v1926 = vpow.pop %v1925
      %v1927 = vmul.f32 %v1880, 1.442695
      %v1928 = vpow.pop %v1927
      %v1929 = vmul.f32 %v1881, 1.442695
      %v1930 = vpow.pop %v1929
      %v1931 = vmul.f32 %v1882, 1.442695
      %v1932 = vpow.pop %v1931
      %v1933 = vmul.f32 %v1883, 1.442695
      %v1934 = vpow.pop %v1933
      %v1935 = vmul.f32 %v1884, 1.442695
      %v1936 = vpow.pop %v1935
      %v1937 = vmul.f32 %v1885, 1.442695
      %v1938 = vpow.pop %v1937
      %v1939 = vmul.f32 %v1886, 1.442695
      %v1940 = vpow.pop %v1939
      %v1941 = vmul.f32 %v1887, 1.442695
      %v1942 = vpow.pop %v1941
      %v1943 = vmul.f32 %v1888, 1.442695
      %v1944 = vpow.pop %v1943
      %v1945 = vmul.f32 %v1889, 1.442695
      %v1946 = vpow.pop %v1945
      %v1947 = vmul.f32 %v1890, 1.442695
      %v1948 = vpow.pop %v1947
      %v1949 = vmul.f32 %v1891, 1.442695
      %v1950 = vpow.pop %v1949
      %v1951 = vmul.f32 %v1892, 1.442695
      %v1952 = vpow.pop %v1951
      %v1953 = vmul.f32 %v1893, 1.442695
      %v1954 = vpow.pop %v1953
      %v1955 = vmul.f32 %v1894, 1.442695
      %v1956 = vpow.pop %v1955
      %v1957 = vmul.f32 %v1895, 1.442695
      %v1958 = vpow.pop %v1957
      %v1959 = vmul.f32 %v1896, 1.442695
      %v1960 = vpow.pop %v1959
      %v1961 = vadd.f32 %v1898, %v1900
      %v1962 = vadd.f32 %v1961, %v1902
      %v1963 = vadd.f32 %v1962, %v1904
      %v1964 = vadd.f32 %v1963, %v1906
      %v1965 = vadd.f32 %v1964, %v1908
      %v1966 = vadd.f32 %v1965, %v1910
      %v1967 = vadd.f32 %v1966, %v1912
      %v1968 = vadd.f32 %v1967, %v1914
      %v1969 = vadd.f32 %v1968, %v1916
      %v1970 = vadd.f32 %v1969, %v1918
      %v1971 = vadd.f32 %v1970, %v1920
      %v1972 = vadd.f32 %v1971, %v1922
      %v1973 = vadd.f32 %v1972, %v1924
      %v1974 = vadd.f32 %v1973, %v1926
      %v1975 = vadd.f32 %v1974, %v1928
      %v1976 = vadd.f32 %v1975, %v1930
      %v1977 = vadd.f32 %v1976, %v1932
      %v1978 = vadd.f32 %v1977, %v1934
      %v1979 = vadd.f32 %v1978, %v1936
      %v1980 = vadd.f32 %v1979, %v1938
      %v1981 = vadd.f32 %v1980, %v1940
      %v1982 = vadd.f32 %v1981, %v1942
      %v1983 = vadd.f32 %v1982, %v1944
      %v1984 = vadd.f32 %v1983, %v1946
      %v1985 = vadd.f32 %v1984, %v1948
      %v1986 = vadd.f32 %v1985, %v1950
      %v1987 = vadd.f32 %v1986, %v1952
      %v1988 = vadd.f32 %v1987, %v1954
      %v1989 = vadd.f32 %v1988, %v1956
      %v1990 = vadd.f32 %v1989, %v1958
      %v1991 = vadd.f32 %v1990, %v1960
      %v1992 = vrot.slane %v1991, 4
      %v1993 = vadd.f32 %v1991, %v1992
      %v1994 = vrot.slane %v1993, 2
      %v1995 = vadd.f32 %v1993, %v1994
      %v1996 = vrot.slane %v1995, 1
      %v1997 = vadd.f32 %v1995, %v1996
      %v1998 = vpack.c.bf16 %v1900, %v1898
      %v1999 = vpack.c.bf16 %v1904, %v1902
      %v2000 = vpack.c.bf16 %v1908, %v1906
      %v2001 = vpack.c.bf16 %v1912, %v1910
      %v2002 = vpack.c.bf16 %v1916, %v1914
      %v2003 = vpack.c.bf16 %v1920, %v1918
      %v2004 = vpack.c.bf16 %v1924, %v1922
      %v2005 = vpack.c.bf16 %v1928, %v1926
      %v2006 = vpack.c.bf16 %v1932, %v1930
      %v2007 = vpack.c.bf16 %v1936, %v1934
      %v2008 = vpack.c.bf16 %v1940, %v1938
      %v2009 = vpack.c.bf16 %v1944, %v1942
      %v2010 = vpack.c.bf16 %v1948, %v1946
      %v2011 = vpack.c.bf16 %v1952, %v1950
      %v2012 = vpack.c.bf16 %v1956, %v1954
      %v2013 = vpack.c.bf16 %v1960, %v1958
      %2014 = vmatprep.subr.bf16.mxu0 0
      %2015 = vmatpush1.bf16.msra.mxu0 %v1998
      %2016 = vmatprep.subr.bf16.mxu0 0
      %2017 = vmatpush1.bf16.msra.mxu0 %v1999
      %2018 = vmatprep.subr.bf16.mxu0 0
      %2019 = vmatpush1.bf16.msra.mxu0 %v2000
      %2020 = vmatprep.subr.bf16.mxu0 0
      %2021 = vmatpush1.bf16.msra.mxu0 %v2001
      %2022 = vmatprep.subr.bf16.mxu0 0
      %2023 = vmatpush1.bf16.msra.mxu0 %v2002
      %2024 = vmatprep.subr.bf16.mxu0 0
      %2025 = vmatpush1.bf16.msra.mxu0 %v2003
      %2026 = vmatprep.subr.bf16.mxu0 0
      %2027 = vmatpush1.bf16.msra.mxu0 %v2004
      %2028 = vmatprep.subr.bf16.mxu0 0
      %2029 = vmatpush1.bf16.msra.mxu0 %v2005
      %2030 = vmatprep.subr.bf16.mxu0 0
      %2031 = vmatpush1.bf16.msra.mxu0 %v2006
      %2032 = vmatprep.subr.bf16.mxu0 0
      %2033 = vmatpush1.bf16.msra.mxu0 %v2007
      %2034 = vmatprep.subr.bf16.mxu0 0
      %2035 = vmatpush1.bf16.msra.mxu0 %v2008
      %2036 = vmatprep.subr.bf16.mxu0 0
      %2037 = vmatpush1.bf16.msra.mxu0 %v2009
      %2038 = vmatprep.subr.bf16.mxu0 0
      %2039 = vmatpush1.bf16.msra.mxu0 %v2010
      %2040 = vmatprep.subr.bf16.mxu0 0
      %2041 = vmatpush1.bf16.msra.mxu0 %v2011
      %2042 = vmatprep.subr.bf16.mxu0 0
      %2043 = vmatpush1.bf16.msra.mxu0 %v2012
      %2044 = vmatprep.subr.bf16.mxu0 0
      %2045 = vmatpush1.bf16.msra.mxu0 %v2013
      %2046 = vmatprep.mubr.bf16.mxu0 %v1581
      %2047 = vmatmul.mubr.bf16.gmra.mrb[0].mxu0 %v1580
      %v2048 = vpop.f32.mrb[0].mxu0
      %v2049 = vadd.f32 0.0, %v2048
      %v2050 = vpop.f32.mrb[0].mxu0
      %v2051 = vpop.f32.mrb[0].mxu0
      %v2052 = vpop.f32.mrb[0].mxu0
      %2053 = vdwg.mxu0
      %v2054 = vpack.c.bf16 %v2049, %v2049
      %v2056 = vsel %vm1406, %v1582, 0
      %v2059 = vsel %vm1410, %v2054, 0
      %2061 = vmatprep.subr.bf16.mxu0 0
      %2062 = vmatpush1.bf16.msra.mxu0 %v2059
      %2063 = vmatprep.subr.bf16.mxu0 0
      %2064 = vmatpush1.bf16.msra.mxu0 0
      %2065 = vmatprep.subr.bf16.mxu0 0
      %2066 = vmatpush1.bf16.msra.mxu0 0
      %2067 = vmatprep.subr.bf16.mxu0 0
      %2068 = vmatpush1.bf16.msra.mxu0 0
      %2069 = vmatprep.subr.bf16.mxu0 0
      %2070 = vmatpush1.bf16.msra.mxu0 0
      %2071 = vmatprep.subr.bf16.mxu0 0
      %2072 = vmatpush1.bf16.msra.mxu0 0
      %2073 = vmatprep.subr.bf16.mxu0 0
      %2074 = vmatpush1.bf16.msra.mxu0 0
      %2075 = vmatprep.subr.bf16.mxu0 0
      %2076 = vmatpush1.bf16.msra.mxu0 0
      %2077 = vmatprep.subr.bf16.mxu0 0
      %2078 = vmatpush1.bf16.msra.mxu0 0
      %2079 = vmatprep.subr.bf16.mxu0 0
      %2080 = vmatpush1.bf16.msra.mxu0 0
      %2081 = vmatprep.subr.bf16.mxu0 0
      %2082 = vmatpush1.bf16.msra.mxu0 0
      %2083 = vmatprep.subr.bf16.mxu0 0
      %2084 = vmatpush1.bf16.msra.mxu0 0
      %2085 = vmatprep.subr.bf16.mxu0 0
      %2086 = vmatpush1.bf16.msra.mxu0 0
      %2087 = vmatprep.subr.bf16.mxu0 0
      %2088 = vmatpush1.bf16.msra.mxu0 0
      %2089 = vmatprep.subr.bf16.mxu0 0
      %2090 = vmatpush1.bf16.msra.mxu0 0
      %2091 = vmatprep.subr.bf16.mxu0 0
      %2092 = vmatpush1.bf16.msra.mxu0 0
      %2093 = vmatprep.mubr.bf16.mxu0 0
      %2094 = vmatmul.mubr.bf16.gmra.mrb[0].mxu0 %v2056
      %v2095 = vpop.f32.mrb[0].mxu0
      %v2096 = vadd.f32 0.0, %v2095
      %v2097 = vpop.f32.mrb[0].mxu0
      %v2098 = vpop.f32.mrb[0].mxu0
      %v2099 = vpop.f32.mrb[0].mxu0
      %2100 = vdwg.mxu0
      %v2101 = vrcp.pop %v1997
      %v2102 = vmul.f32 %v2096, %v2101
      %2104 = vset.pattern.permute.xlu0 0
      %2105 = vperm.xlu0 %2104, %v1583
      %v2106 = vpop.permute.xlu0 %2105
      %v2108 = vadd.f32 %v2102, %v2106
      %2109 = vst [vmem:[%s359] sm:$0xf] %v2108
      %v2111 = vsel %vm1410, %v1459, 0
      %2113 = vmatprep.subr.bf16.mxu0 0
      %2114 = vmatpush1.bf16.msra.mxu0 %v2111
      %2115 = vmatprep.subr.bf16.mxu0 0
      %2116 = vmatpush1.bf16.msra.mxu0 0
      %2117 = vmatprep.subr.bf16.mxu0 0
      %2118 = vmatpush1.bf16.msra.mxu0 0
      %2119 = vmatprep.subr.bf16.mxu0 0
      %2120 = vmatpush1.bf16.msra.mxu0 0
      %2121 = vmatprep.subr.bf16.mxu0 0
      %2122 = vmatpush1.bf16.msra.mxu0 0
      %2123 = vmatprep.subr.bf16.mxu0 0
      %2124 = vmatpush1.bf16.msra.mxu0 0
      %2125 = vmatprep.subr.bf16.mxu0 0
      %2126 = vmatpush1.bf16.msra.mxu0 0
      %2127 = vmatprep.subr.bf16.mxu0 0
      %2128 = vmatpush1.bf16.msra.mxu0 0
      %2129 = vmatprep.subr.bf16.mxu0 0
      %2130 = vmatpush1.bf16.msra.mxu0 0
      %2131 = vmatprep.subr.bf16.mxu0 0
      %2132 = vmatpush1.bf16.msra.mxu0 0
      %2133 = vmatprep.subr.bf16.mxu0 0
      %2134 = vmatpush1.bf16.msra.mxu0 0
      %2135 = vmatprep.subr.bf16.mxu0 0
      %2136 = vmatpush1.bf16.msra.mxu0 0
      %2137 = vmatprep.subr.bf16.mxu0 0
      %2138 = vmatpush1.bf16.msra.mxu0 0
      %2139 = vmatprep.subr.bf16.mxu0 0
      %2140 = vmatpush1.bf16.msra.mxu0 0
      %2141 = vmatprep.subr.bf16.mxu0 0
      %2142 = vmatpush1.bf16.msra.mxu0 0
      %2143 = vmatprep.subr.bf16.mxu0 0
      %2144 = vmatpush1.bf16.msra.mxu0 0
      %2145 = vmatprep.mubr.bf16.mxu0 0
      %2146 = vmatmul.mubr.bf16.gmra.mrb[0].mxu0 %v1617
      %v2147 = vpop.f32.mrb[0].mxu0
      %v2148 = vadd.f32 0.0, %v2147
      %v2149 = vpop.f32.mrb[0].mxu0
      %v2150 = vpop.f32.mrb[0].mxu0
      %v2151 = vadd.f32 0.0, %v2150
      %v2152 = vpop.f32.mrb[0].mxu0
      %2153 = vmatprep.mubr.bf16.mxu0 0
      %2154 = vmatmul.mubr.bf16.gmra.mrb[0].mxu0 %v1620
      %v2155 = vpop.f32.mrb[0].mxu0
      %v2156 = vadd.f32 0.0, %v2155
      %v2157 = vpop.f32.mrb[0].mxu0
      %v2158 = vpop.f32.mrb[0].mxu0
      %v2159 = vadd.f32 0.0, %v2158
      %v2160 = vpop.f32.mrb[0].mxu0
      %2161 = vmatprep.mubr.bf16.mxu0 0
      %2162 = vmatmul.mubr.bf16.gmra.mrb[0].mxu0 %v1623
      %v2163 = vpop.f32.mrb[0].mxu0
      %v2164 = vadd.f32 0.0, %v2163
      %v2165 = vpop.f32.mrb[0].mxu0
      %v2166 = vpop.f32.mrb[0].mxu0
      %v2167 = vadd.f32 0.0, %v2166
      %v2168 = vpop.f32.mrb[0].mxu0
      %2169 = vmatprep.mubr.bf16.mxu0 0
      %2170 = vmatmul.mubr.bf16.gmra.mrb[0].mxu0 %v1626
      %v2171 = vpop.f32.mrb[0].mxu0
      %v2172 = vadd.f32 0.0, %v2171
      %v2173 = vpop.f32.mrb[0].mxu0
      %v2174 = vpop.f32.mrb[0].mxu0
      %v2175 = vadd.f32 0.0, %v2174
      %v2176 = vpop.f32.mrb[0].mxu0
      %2177 = vmatprep.mubr.bf16.mxu0 0
      %2178 = vmatmul.mubr.bf16.gmra.mrb[0].mxu0 %v1629
      %v2179 = vpop.f32.mrb[0].mxu0
      %v2180 = vadd.f32 0.0, %v2179
      %v2181 = vpop.f32.mrb[0].mxu0
      %v2182 = vpop.f32.mrb[0].mxu0
      %v2183 = vadd.f32 0.0, %v2182
      %v2184 = vpop.f32.mrb[0].mxu0
      %2185 = vmatprep.mubr.bf16.mxu0 0
      %2186 = vmatmul.mubr.bf16.gmra.mrb[0].mxu0 %v1632
      %v2187 = vpop.f32.mrb[0].mxu0
      %v2188 = vadd.f32 0.0, %v2187
      %v2189 = vpop.f32.mrb[0].mxu0
      %v2190 = vpop.f32.mrb[0].mxu0
      %v2191 = vadd.f32 0.0, %v2190
      %v2192 = vpop.f32.mrb[0].mxu0
      %2193 = vmatprep.mubr.bf16.mxu0 0
      %2194 = vmatmul.mubr.bf16.gmra.mrb[0].mxu0 %v1635
      %v2195 = vpop.f32.mrb[0].mxu0
      %v2196 = vadd.f32 0.0, %v2195
      %v2197 = vpop.f32.mrb[0].mxu0
      %v2198 = vpop.f32.mrb[0].mxu0
      %v2199 = vadd.f32 0.0, %v2198
      %v2200 = vpop.f32.mrb[0].mxu0
      %2201 = vmatprep.mubr.bf16.mxu0 0
      %2202 = vmatmul.mubr.bf16.gmra.mrb[0].mxu0 %v1638
      %v2203 = vpop.f32.mrb[0].mxu0
      %v2204 = vadd.f32 0.0, %v2203
      %v2205 = vpop.f32.mrb[0].mxu0
      %v2206 = vpop.f32.mrb[0].mxu0
      %v2207 = vadd.f32 0.0, %v2206
      %v2208 = vpop.f32.mrb[0].mxu0
      %2209 = vmatprep.mubr.bf16.mxu0 0
      %2210 = vmatmul.mubr.bf16.gmra.mrb[0].mxu0 %v1641
      %v2211 = vpop.f32.mrb[0].mxu0
      %v2212 = vadd.f32 0.0, %v2211
      %v2213 = vpop.f32.mrb[0].mxu0
      %v2214 = vpop.f32.mrb[0].mxu0
      %v2215 = vadd.f32 0.0, %v2214
      %v2216 = vpop.f32.mrb[0].mxu0
      %2217 = vmatprep.mubr.bf16.mxu0 0
      %2218 = vmatmul.mubr.bf16.gmra.mrb[0].mxu0 %v1644
      %v2219 = vpop.f32.mrb[0].mxu0
      %v2220 = vadd.f32 0.0, %v2219
      %v2221 = vpop.f32.mrb[0].mxu0
      %v2222 = vpop.f32.mrb[0].mxu0
      %v2223 = vadd.f32 0.0, %v2222
      %v2224 = vpop.f32.mrb[0].mxu0
      %2225 = vmatprep.mubr.bf16.mxu0 0
      %2226 = vmatmul.mubr.bf16.gmra.mrb[0].mxu0 %v1647
      %v2227 = vpop.f32.mrb[0].mxu0
      %v2228 = vadd.f32 0.0, %v2227
      %v2229 = vpop.f32.mrb[0].mxu0
      %v2230 = vpop.f32.mrb[0].mxu0
      %v2231 = vadd.f32 0.0, %v2230
      %v2232 = vpop.f32.mrb[0].mxu0
      %2233 = vmatprep.mubr.bf16.mxu0 0
      %2234 = vmatmul.mubr.bf16.gmra.mrb[0].mxu0 %v1650
      %v2235 = vpop.f32.mrb[0].mxu0
      %v2236 = vadd.f32 0.0, %v2235
      %v2237 = vpop.f32.mrb[0].mxu0
      %v2238 = vpop.f32.mrb[0].mxu0
      %v2239 = vadd.f32 0.0, %v2238
      %v2240 = vpop.f32.mrb[0].mxu0
      %2241 = vmatprep.mubr.bf16.mxu0 0
      %2242 = vmatmul.mubr.bf16.gmra.mrb[0].mxu0 %v1653
      %v2243 = vpop.f32.mrb[0].mxu0
      %v2244 = vadd.f32 0.0, %v2243
      %v2245 = vpop.f32.mrb[0].mxu0
      %v2246 = vpop.f32.mrb[0].mxu0
      %v2247 = vadd.f32 0.0, %v2246
      %v2248 = vpop.f32.mrb[0].mxu0
      %2249 = vmatprep.mubr.bf16.mxu0 0
      %2250 = vmatmul.mubr.bf16.gmra.mrb[0].mxu0 %v1656
      %v2251 = vpop.f32.mrb[0].mxu0
      %v2252 = vadd.f32 0.0, %v2251
      %v2253 = vpop.f32.mrb[0].mxu0
      %v2254 = vpop.f32.mrb[0].mxu0
      %v2255 = vadd.f32 0.0, %v2254
      %v2256 = vpop.f32.mrb[0].mxu0
      %2257 = vmatprep.mubr.bf16.mxu0 0
      %2258 = vmatmul.mubr.bf16.gmra.mrb[0].mxu0 %v1659
      %v2259 = vpop.f32.mrb[0].mxu0
      %v2260 = vadd.f32 0.0, %v2259
      %v2261 = vpop.f32.mrb[0].mxu0
      %v2262 = vpop.f32.mrb[0].mxu0
      %v2263 = vadd.f32 0.0, %v2262
      %v2264 = vpop.f32.mrb[0].mxu0
      %2265 = vmatprep.mubr.bf16.mxu0 0
      %2266 = vmatmul.mubr.bf16.gmra.mrb[0].mxu0 %v1662
      %v2267 = vpop.f32.mrb[0].mxu0
      %v2268 = vadd.f32 0.0, %v2267
      %v2269 = vpop.f32.mrb[0].mxu0
      %v2270 = vpop.f32.mrb[0].mxu0
      %v2271 = vadd.f32 0.0, %v2270
      %v2272 = vpop.f32.mrb[0].mxu0
      %2273 = vdwg.mxu0
      %v2274 = vmax.f32 %v2148, %v2164
      %v2275 = vmax.f32 %v2151, %v2167
      %v2276 = vmax.f32 %v2156, %v2172
      %v2277 = vmax.f32 %v2159, %v2175
      %v2278 = vmax.f32 %v2274, %v2180
      %v2279 = vmax.f32 %v2275, %v2183
      %v2280 = vmax.f32 %v2276, %v2188
      %v2281 = vmax.f32 %v2277, %v2191
      %v2282 = vmax.f32 %v2278, %v2196
      %v2283 = vmax.f32 %v2279, %v2199
      %v2284 = vmax.f32 %v2280, %v2204
      %v2285 = vmax.f32 %v2281, %v2207
      %v2286 = vmax.f32 %v2282, %v2212
      %v2287 = vmax.f32 %v2283, %v2215
      %v2288 = vmax.f32 %v2284, %v2220
      %v2289 = vmax.f32 %v2285, %v2223
      %v2290 = vmax.f32 %v2286, %v2228
      %v2291 = vmax.f32 %v2287, %v2231
      %v2292 = vmax.f32 %v2288, %v2236
      %v2293 = vmax.f32 %v2289, %v2239
      %v2294 = vmax.f32 %v2290, %v2244
      %v2295 = vmax.f32 %v2291, %v2247
      %v2296 = vmax.f32 %v2292, %v2252
      %v2297 = vmax.f32 %v2293, %v2255
      %v2298 = vmax.f32 %v2294, %v2260
      %v2299 = vmax.f32 %v2295, %v2263
      %v2300 = vmax.f32 %v2296, %v2268
      %v2301 = vmax.f32 %v2297, %v2271
      %v2302 = vmax.f32 %v2298, %v2299
      %v2303 = vmax.f32 %v2300, %v2301
      %v2304 = vmax.f32 %v2302, %v2303
      %v2305 = vrot.slane %v2304, 4
      %v2306 = vmax.f32 %v2304, %v2305
      %v2307 = vrot.slane %v2306, 2
      %v2308 = vmax.f32 %v2306, %v2307
      %v2309 = vrot.slane %v2308, 1
      %v2310 = vmax.f32 %v2308, %v2309
      %v2311 = vsub.f32 %v2148, %v2310
      %v2312 = vsub.f32 %v2151, %v2310
      %v2313 = vsub.f32 %v2156, %v2310
      %v2314 = vsub.f32 %v2159, %v2310
      %v2315 = vsub.f32 %v2164, %v2310
      %v2316 = vsub.f32 %v2167, %v2310
      %v2317 = vsub.f32 %v2172, %v2310
      %v2318 = vsub.f32 %v2175, %v2310
      %v2319 = vsub.f32 %v2180, %v2310
      %v2320 = vsub.f32 %v2183, %v2310
      %v2321 = vsub.f32 %v2188, %v2310
      %v2322 = vsub.f32 %v2191, %v2310
      %v2323 = vsub.f32 %v2196, %v2310
      %v2324 = vsub.f32 %v2199, %v2310
      %v2325 = vsub.f32 %v2204, %v2310
      %v2326 = vsub.f32 %v2207, %v2310
      %v2327 = vsub.f32 %v2212, %v2310
      %v2328 = vsub.f32 %v2215, %v2310
      %v2329 = vsub.f32 %v2220, %v2310
      %v2330 = vsub.f32 %v2223, %v2310
      %v2331 = vsub.f32 %v2228, %v2310
      %v2332 = vsub.f32 %v2231, %v2310
      %v2333 = vsub.f32 %v2236, %v2310
      %v2334 = vsub.f32 %v2239, %v2310
      %v2335 = vsub.f32 %v2244, %v2310
      %v2336 = vsub.f32 %v2247, %v2310
      %v2337 = vsub.f32 %v2252, %v2310
      %v2338 = vsub.f32 %v2255, %v2310
      %v2339 = vsub.f32 %v2260, %v2310
      %v2340 = vsub.f32 %v2263, %v2310
      %v2341 = vsub.f32 %v2268, %v2310
      %v2342 = vsub.f32 %v2271, %v2310
      %v2343 = vmul.f32 %v2311, 1.442695
      %v2344 = vpow.pop %v2343
      %v2345 = vmul.f32 %v2312, 1.442695
      %v2346 = vpow.pop %v2345
      %v2347 = vmul.f32 %v2313, 1.442695
      %v2348 = vpow.pop %v2347
      %v2349 = vmul.f32 %v2314, 1.442695
      %v2350 = vpow.pop %v2349
      %v2351 = vmul.f32 %v2315, 1.442695
      %v2352 = vpow.pop %v2351
      %v2353 = vmul.f32 %v2316, 1.442695
      %v2354 = vpow.pop %v2353
      %v2355 = vmul.f32 %v2317, 1.442695
      %v2356 = vpow.pop %v2355
      %v2357 = vmul.f32 %v2318, 1.442695
      %v2358 = vpow.pop %v2357
      %v2359 = vmul.f32 %v2319, 1.442695
      %v2360 = vpow.pop %v2359
      %v2361 = vmul.f32 %v2320, 1.442695
      %v2362 = vpow.pop %v2361
      %v2363 = vmul.f32 %v2321, 1.442695
      %v2364 = vpow.pop %v2363
      %v2365 = vmul.f32 %v2322, 1.442695
      %v2366 = vpow.pop %v2365
      %v2367 = vmul.f32 %v2323, 1.442695
      %v2368 = vpow.pop %v2367
      %v2369 = vmul.f32 %v2324, 1.442695
      %v2370 = vpow.pop %v2369
      %v2371 = vmul.f32 %v2325, 1.442695
      %v2372 = vpow.pop %v2371
      %v2373 = vmul.f32 %v2326, 1.442695
      %v2374 = vpow.pop %v2373
      %v2375 = vmul.f32 %v2327, 1.442695
      %v2376 = vpow.pop %v2375
      %v2377 = vmul.f32 %v2328, 1.442695
      %v2378 = vpow.pop %v2377
      %v2379 = vmul.f32 %v2329, 1.442695
      %v2380 = vpow.pop %v2379
      %v2381 = vmul.f32 %v2330, 1.442695
      %v2382 = vpow.pop %v2381
      %v2383 = vmul.f32 %v2331, 1.442695
      %v2384 = vpow.pop %v2383
      %v2385 = vmul.f32 %v2332, 1.442695
      %v2386 = vpow.pop %v2385
      %v2387 = vmul.f32 %v2333, 1.442695
      %v2388 = vpow.pop %v2387
      %v2389 = vmul.f32 %v2334, 1.442695
      %v2390 = vpow.pop %v2389
      %v2391 = vmul.f32 %v2335, 1.442695
      %v2392 = vpow.pop %v2391
      %v2393 = vmul.f32 %v2336, 1.442695
      %v2394 = vpow.pop %v2393
      %v2395 = vmul.f32 %v2337, 1.442695
      %v2396 = vpow.pop %v2395
      %v2397 = vmul.f32 %v2338, 1.442695
      %v2398 = vpow.pop %v2397
      %v2399 = vmul.f32 %v2339, 1.442695
      %v2400 = vpow.pop %v2399
      %v2401 = vmul.f32 %v2340, 1.442695
      %v2402 = vpow.pop %v2401
      %v2403 = vmul.f32 %v2341, 1.442695
      %v2404 = vpow.pop %v2403
      %v2405 = vmul.f32 %v2342, 1.442695
      %v2406 = vpow.pop %v2405
      %v2407 = vadd.f32 %v2344, %v2346
      %v2408 = vadd.f32 %v2407, %v2348
      %v2409 = vadd.f32 %v2408, %v2350
      %v2410 = vadd.f32 %v2409, %v2352
      %v2411 = vadd.f32 %v2410, %v2354
      %v2412 = vadd.f32 %v2411, %v2356
      %v2413 = vadd.f32 %v2412, %v2358
      %v2414 = vadd.f32 %v2413, %v2360
      %v2415 = vadd.f32 %v2414, %v2362
      %v2416 = vadd.f32 %v2415, %v2364
      %v2417 = vadd.f32 %v2416, %v2366
      %v2418 = vadd.f32 %v2417, %v2368
      %v2419 = vadd.f32 %v2418, %v2370
      %v2420 = vadd.f32 %v2419, %v2372
      %v2421 = vadd.f32 %v2420, %v2374
      %v2422 = vadd.f32 %v2421, %v2376
      %v2423 = vadd.f32 %v2422, %v2378
      %v2424 = vadd.f32 %v2423, %v2380
      %v2425 = vadd.f32 %v2424, %v2382
      %v2426 = vadd.f32 %v2425, %v2384
      %v2427 = vadd.f32 %v2426, %v2386
      %v2428 = vadd.f32 %v2427, %v2388
      %v2429 = vadd.f32 %v2428, %v2390
      %v2430 = vadd.f32 %v2429, %v2392
      %v2431 = vadd.f32 %v2430, %v2394
      %v2432 = vadd.f32 %v2431, %v2396
      %v2433 = vadd.f32 %v2432, %v2398
      %v2434 = vadd.f32 %v2433, %v2400
      %v2435 = vadd.f32 %v2434, %v2402
      %v2436 = vadd.f32 %v2435, %v2404
      %v2437 = vadd.f32 %v2436, %v2406
      %v2438 = vrot.slane %v2437, 4
      %v2439 = vadd.f32 %v2437, %v2438
      %v2440 = vrot.slane %v2439, 2
      %v2441 = vadd.f32 %v2439, %v2440
      %v2442 = vrot.slane %v2441, 1
      %v2443 = vadd.f32 %v2441, %v2442
      %v2444 = vpack.c.bf16 %v2346, %v2344
      %v2445 = vpack.c.bf16 %v2350, %v2348
      %v2446 = vpack.c.bf16 %v2354, %v2352
      %v2447 = vpack.c.bf16 %v2358, %v2356
      %v2448 = vpack.c.bf16 %v2362, %v2360
      %v2449 = vpack.c.bf16 %v2366, %v2364
      %v2450 = vpack.c.bf16 %v2370, %v2368
      %v2451 = vpack.c.bf16 %v2374, %v2372
      %v2452 = vpack.c.bf16 %v2378, %v2376
      %v2453 = vpack.c.bf16 %v2382, %v2380
      %v2454 = vpack.c.bf16 %v2386, %v2384
      %v2455 = vpack.c.bf16 %v2390, %v2388
      %v2456 = vpack.c.bf16 %v2394, %v2392
      %v2457 = vpack.c.bf16 %v2398, %v2396
      %v2458 = vpack.c.bf16 %v2402, %v2400
      %v2459 = vpack.c.bf16 %v2406, %v2404
      %2460 = vmatprep.subr.bf16.mxu0 0
      %2461 = vmatpush1.bf16.msra.mxu0 %v2444
      %2462 = vmatprep.subr.bf16.mxu0 0
      %2463 = vmatpush1.bf16.msra.mxu0 %v2445
      %2464 = vmatprep.subr.bf16.mxu0 0
      %2465 = vmatpush1.bf16.msra.mxu0 %v2446
      %2466 = vmatprep.subr.bf16.mxu0 0
      %2467 = vmatpush1.bf16.msra.mxu0 %v2447
      %2468 = vmatprep.subr.bf16.mxu0 0
      %2469 = vmatpush1.bf16.msra.mxu0 %v2448
      %2470 = vmatprep.subr.bf16.mxu0 0
      %2471 = vmatpush1.bf16.msra.mxu0 %v2449
      %2472 = vmatprep.subr.bf16.mxu0 0
      %2473 = vmatpush1.bf16.msra.mxu0 %v2450
      %2474 = vmatprep.subr.bf16.mxu0 0
      %2475 = vmatpush1.bf16.msra.mxu0 %v2451
      %2476 = vmatprep.subr.bf16.mxu0 0
      %2477 = vmatpush1.bf16.msra.mxu0 %v2452
      %2478 = vmatprep.subr.bf16.mxu0 0
      %2479 = vmatpush1.bf16.msra.mxu0 %v2453
      %2480 = vmatprep.subr.bf16.mxu0 0
      %2481 = vmatpush1.bf16.msra.mxu0 %v2454
      %2482 = vmatprep.subr.bf16.mxu0 0
      %2483 = vmatpush1.bf16.msra.mxu0 %v2455
      %2484 = vmatprep.subr.bf16.mxu0 0
      %2485 = vmatpush1.bf16.msra.mxu0 %v2456
      %2486 = vmatprep.subr.bf16.mxu0 0
      %2487 = vmatpush1.bf16.msra.mxu0 %v2457
      %2488 = vmatprep.subr.bf16.mxu0 0
      %2489 = vmatpush1.bf16.msra.mxu0 %v2458
      %2490 = vmatprep.subr.bf16.mxu0 0
      %2491 = vmatpush1.bf16.msra.mxu0 %v2459
      %2492 = vmatprep.mubr.bf16.mxu0 %v1581
      %2493 = vmatmul.mubr.bf16.gmra.mrb[0].mxu0 %v1580
      %v2494 = vpop.f32.mrb[0].mxu0
      %v2495 = vadd.f32 0.0, %v2494
      %v2496 = vpop.f32.mrb[0].mxu0
      %v2497 = vpop.f32.mrb[0].mxu0
      %v2498 = vpop.f32.mrb[0].mxu0
      %2499 = vdwg.mxu0
      %v2500 = vpack.c.bf16 %v2495, %v2495
      %v2502 = vsel %vm1410, %v2500, 0
      %2504 = vmatprep.subr.bf16.mxu0 0
      %2505 = vmatpush1.bf16.msra.mxu0 %v2502
      %2506 = vmatprep.subr.bf16.mxu0 0
      %2507 = vmatpush1.bf16.msra.mxu0 0
      %2508 = vmatprep.subr.bf16.mxu0 0
      %2509 = vmatpush1.bf16.msra.mxu0 0
      %2510 = vmatprep.subr.bf16.mxu0 0
      %2511 = vmatpush1.bf16.msra.mxu0 0
      %2512 = vmatprep.subr.bf16.mxu0 0
      %2513 = vmatpush1.bf16.msra.mxu0 0
      %2514 = vmatprep.subr.bf16.mxu0 0
      %2515 = vmatpush1.bf16.msra.mxu0 0
      %2516 = vmatprep.subr.bf16.mxu0 0
      %2517 = vmatpush1.bf16.msra.mxu0 0
      %2518 = vmatprep.subr.bf16.mxu0 0
      %2519 = vmatpush1.bf16.msra.mxu0 0
      %2520 = vmatprep.subr.bf16.mxu0 0
      %2521 = vmatpush1.bf16.msra.mxu0 0
      %2522 = vmatprep.subr.bf16.mxu0 0
      %2523 = vmatpush1.bf16.msra.mxu0 0
      %2524 = vmatprep.subr.bf16.mxu0 0
      %2525 = vmatpush1.bf16.msra.mxu0 0
      %2526 = vmatprep.subr.bf16.mxu0 0
      %2527 = vmatpush1.bf16.msra.mxu0 0
      %2528 = vmatprep.subr.bf16.mxu0 0
      %2529 = vmatpush1.bf16.msra.mxu0 0
      %2530 = vmatprep.subr.bf16.mxu0 0
      %2531 = vmatpush1.bf16.msra.mxu0 0
      %2532 = vmatprep.subr.bf16.mxu0 0
      %2533 = vmatpush1.bf16.msra.mxu0 0
      %2534 = vmatprep.subr.bf16.mxu0 0
      %2535 = vmatpush1.bf16.msra.mxu0 0
      %2536 = vmatprep.mubr.bf16.mxu0 0
      %2537 = vmatmul.mubr.bf16.gmra.mrb[0].mxu0 %v2056
      %v2538 = vpop.f32.mrb[0].mxu0
      %v2539 = vadd.f32 0.0, %v2538
      %v2540 = vpop.f32.mrb[0].mxu0
      %v2541 = vpop.f32.mrb[0].mxu0
      %v2542 = vpop.f32.mrb[0].mxu0
      %2543 = vdwg.mxu0
      %v2544 = vrcp.pop %v2443
      %v2545 = vmul.f32 %v2539, %v2544
      %v2546 = vadd.f32 %v2545, %v2106
      %2547 = vst [vmem:[%s359 + $0x4] sm:$0xf] %v2546
      %p2548 = scmp.lt.s32.totalorder %s21, 1
      %s2549 = scalar_select %p2548, %s21, 1
      %s2550 = smul.addr %s2549, 2
      %s2551 = smul.addr %s2550, 4
      %s2552 = scalar_lea.vmem %s10, %s2551
      // Predicated region
      $region61: #{attention_forward.1} parent=59 // pred_check
        %p2553 = pneg %p254
      $region62: #{attention_forward.1} parent=59 // pred_check_branch
        %2555 = sbr.rel (%p2553) target = $region64
      $region63: #{attention_forward.1} parent=59 // pred_region
        _
      $region64: #{attention_forward.1} parent=59 // pred_fallthru
        _
    $region60: #{attention_forward.1} parent=5 // pred_fallthru
      _
    %p2556 = scmp.le.s32.totalorder 2, %s16
    // Predicated region
    $region65: #{attention_forward.1} parent=5 // pred_check
      %p2557 = pneg %p2556
    $region66: #{attention_forward.1} parent=5 // pred_check_branch
      %2559 = sbr.rel (%p2557) target = $region68
    $region67: #{attention_forward.1} parent=5 // pred_region
      %s2560 = ssub.s32 %s16, 2
      // Predicated region
      $region69: #{attention_forward.1} parent=67 // pred_check
        %p2561 = pneg %p260
      $region70: #{attention_forward.1} parent=67 // pred_check_branch
        %2563 = sbr.rel (%p2561) target = $region72
      $region71: #{attention_forward.1} parent=67 // pred_region
        %p2564 = scmp.lt.s32.totalorder %s22, 1
        %s2565 = scalar_select %p2564, %s22, 1
        %s2566 = smul.addr %s2565, 2
        %s2567 = smul.addr %s2566, 4
        %s2568 = scalar_lea.vmem %s10, %s2567
      $region72: #{attention_forward.1} parent=67 // pred_fallthru
        _
    $region68: #{attention_forward.1} parent=5 // pred_fallthru
      _
  $region6: #{attention_forward.1} parent=0 // loop_footer
    %s20 = sadd.s32 1, %s16
  $region7: #{attention_forward.1} parent=0 // loop_footer_branch
    %15 = sbr.rel target = $region3
  $region8: #{attention_forward.1} parent=0 // loop_exit
    _

</llo_original>
